<compile_context>
chip_gen: v5e
topology: v5e:2x2
jax: 0.10.0
libtpu: 0.0.40
codegen_flags: <defaults>
</compile_context>

<pallas_src>
import functools

import jax
import jax.numpy as jnp
from jax.experimental import pallas as pl
from jax.experimental.pallas import tpu as pltpu


# ---------------------------------------------------------------------------
# Small helpers
# ---------------------------------------------------------------------------
def _round_up(x, m):
    return ((x + m - 1) // m) * m


def _default_elementwise_dtype(compute_dtype):
    """bf16 bias+ReLU on chips with a bf16 VALU (v6e/v7x); f32 elsewhere."""
    if jnp.dtype(compute_dtype) == jnp.dtype(jnp.float32):
        return jnp.float32
    try:
        kind = jax.devices()[0].device_kind.lower()
    except Exception:
        kind = ""
    if any(v in kind for v in ("v2", "v3", "v4", "v5")):
        return jnp.float32  # no native bf16 VALU on these generations
    return jnp.bfloat16


def _choose_batch_tile(batch, requested):
    """Pick the batch tile (lane) width.

    * requested tile rounded to a multiple of 128 (lane width); default 1024
      amortizes the ~0.35 us per-grid-step overhead and fills the MXU N dim.
    * small-batch clamp: never pad beyond the next multiple of 128.
    * prefer >= 2 grid tiles so v7x's two TensorCores both get work.
    """
    bt = max(128, (requested // 128) * 128)
    b128 = _round_up(batch, 128)
    bt = min(bt, b128)
    if b128 // bt < 2 and b128 >= 256:
        bt = _round_up(b128 // 2, 128)
    return bt


# ---------------------------------------------------------------------------
# Pallas kernel: fused 4-layer MLP on one batch tile (feature-major layout).
#   x_ref : (bt, in_size)   float32 (cast to compute dtype in-VMEM)
#   wN_ref: (outN, inN)     compute dtype (bf16 or f32)
#   bN_ref: (outN, 1)       elementwise dtype (bf16 on v6e/v7x, else f32)
#   w4_ref: (h3, 1) f32 column when final_reduce, else (out, h3) compute dtype
#   b4_ref: (out, 1)        float32
#   o_ref : (out, bt)       float32  -- batch on lanes (lane-dense store)
# ---------------------------------------------------------------------------
def _mlp_kernel(x_ref, w1_ref, b1_ref, w2_ref, b2_ref, w3_ref, b3_ref,
                w4_ref, b4_ref, o_ref, *, final_reduce):
    cdt = w1_ref.dtype   # MXU input dtype (bf16 or f32)
    edt = b1_ref.dtype   # elementwise (bias + ReLU) dtype

    # Cast the small input tile in VMEM (avoids a wrapper-side HBM round trip).
    x = x_ref[...].astype(cdt)                               # (bt, in)

    # Layer 1: contract the feature axis of BOTH operands:
    #   (h1, in) . (bt, in) -> (h1, bt).  The x "transpose" is fused into the
    #   matmul, and the batch stays on the 128 lanes for all downstream ops.
    h = jax.lax.dot_general(w1_ref[...], x, (((1,), (1,)), ((), ())),
                            preferred_element_type=jnp.float32)
    h = jnp.maximum(h.astype(edt) + b1_ref[...], 0.0)
    # dropout1: identity in eval mode

    # Layer 2: (h2, h1) @ (h1, bt) -> (h2, bt)
    h = jnp.dot(w2_ref[...], h.astype(cdt), preferred_element_type=jnp.float32)
    h = jnp.maximum(h.astype(edt) + b2_ref[...], 0.0)
    # hidden dropout: identity in eval mode

    # Layer 3: (h3, h2) @ (h2, bt) -> (h3, bt)
    h = jnp.dot(w3_ref[...], h.astype(cdt), preferred_element_type=jnp.float32)
    h = jnp.maximum(h.astype(edt) + b3_ref[...], 0.0)
    # hidden dropout: identity in eval mode

    if final_reduce:
        # output_size == 1: VPU multiply by the (h3, 1) f32 weight column and
        # sublane (XLU) reduce.  Avoids an N=1 MXU matmul and keeps the (1, bt)
        # output store fully lane-dense.
        y = jnp.sum(h.astype(jnp.float32) * w4_ref[...], axis=0, keepdims=True)
    else:
        y = jnp.dot(w4_ref[...], h.astype(cdt),
                    preferred_element_type=jnp.float32)

    o_ref[...] = (y + b4_ref[...]).astype(o_ref.dtype)


# ---------------------------------------------------------------------------
# One-time parameter preparation (cast/pack weights ONCE, not per forward).
# ---------------------------------------------------------------------------
def prepare_mlp_params(linears, compute_dtype=jnp.bfloat16,
                       elementwise_dtype=None):
    """linears: [(w1,b1),(w2,b2),(w3,b3),(w4,b4)], w: (out,in), b: (out,)."""
    (w1, b1), (w2, b2), (w3, b3), (w4, b4) = linears
    if elementwise_dtype is None:
        elementwise_dtype = _default_elementwise_dtype(compute_dtype)
    cdt, edt = compute_dtype, elementwise_dtype
    final_reduce = (w4.shape[0] == 1)
    col = lambda b, dt: b.reshape(-1, 1).astype(dt)
    return dict(
        w1=w1.astype(cdt), b1=col(b1, edt),
        w2=w2.astype(cdt), b2=col(b2, edt),
        w3=w3.astype(cdt), b3=col(b3, edt),
        # out_size == 1: store the last layer as an (h3, 1) f32 column for the
        # in-kernel VPU multiply + sublane reduce.
        w4=(w4.T.astype(jnp.float32) if final_reduce else w4.astype(cdt)),
        b4=col(b4, jnp.float32),
        final_reduce=final_reduce,
        compute_dtype=cdt,
        elementwise_dtype=edt,
    )


# ---------------------------------------------------------------------------
# Wrapper: tiling + pallas_call.
# ---------------------------------------------------------------------------
def mlp_pallas(x_combined, prepared, *, batch_tile=1024):
    """Fused MLP forward.  x_combined: (B, input_size) float32.

    Returns (B, output_size) float32.
    """
    B, in_size = x_combined.shape
    w1, b1 = prepared["w1"], prepared["b1"]
    w2, b2 = prepared["w2"], prepared["b2"]
    w3, b3 = prepared["w3"], prepared["b3"]
    w4, b4 = prepared["w4"], prepared["b4"]
    final_reduce = prepared["final_reduce"]
    cdt = prepared["compute_dtype"]
    edt = prepared["elementwise_dtype"]

    h1, h2, h3 = w1.shape[0], w2.shape[0], w3.shape[0]
    out_size = b4.shape[0]

    bt = _choose_batch_tile(B, batch_tile)
    b_pad = _round_up(B, bt)
    n_tiles = b_pad // bt

    x = x_combined
    if b_pad != B:
        x = jnp.pad(x, ((0, b_pad - B), (0, 0)))   # zero-pad batch rows

    kernel = functools.partial(_mlp_kernel, final_reduce=final_reduce)
    full = lambda a: pl.BlockSpec(a.shape, lambda i: (0, 0))  # whole-array block

    item = jnp.dtype(cdt).itemsize
    eitem = jnp.dtype(edt).itemsize
    flops = 2 * b_pad * (in_size * h1 + h1 * h2 + h2 * h3 + h3 * out_size)
    bytes_accessed = (
        x.size * x.dtype.itemsize                              # input, read once
        + (w1.size + w2.size + w3.size) * item                 # weights, once/call
        + w4.size * jnp.dtype(w4.dtype).itemsize
        + (b1.size + b2.size + b3.size) * eitem + b4.size * 4  # biases
        + b_pad * out_size * 4)                                # output

    out_t = pl.pallas_call(
        kernel,
        out_shape=jax.ShapeDtypeStruct((out_size, b_pad), jnp.float32),
        grid_spec=pltpu.PrefetchScalarGridSpec(
            num_scalar_prefetch=0,
            grid=(n_tiles,),
            in_specs=[
                pl.BlockSpec((bt, in_size), lambda i: (i, 0)),   # x batch tile
                full(w1), full(b1),
                full(w2), full(b2),
                full(w3), full(b3),
                full(w4), full(b4),
            ],
            out_specs=pl.BlockSpec((out_size, bt), lambda i: (0, i)),
        ),
        compiler_params=pltpu.CompilerParams(
            dimension_semantics=("parallel",),       # batch tiles shard across TCs
            vmem_limit_bytes=48 * 1024 * 1024,       # headroom under v7x's 64 MiB
        ),
        cost_estimate=pl.CostEstimate(flops=flops, transcendentals=0,
                                      bytes_accessed=bytes_accessed),
    )(x, w1, b1, w2, b2, w3, b3, w4, b4)

    return out_t[:, :B].T                                       # (B, out_size)


# ---------------------------------------------------------------------------
# Parameter construction (PyTorch-style layouts and init ranges).
# ---------------------------------------------------------------------------
def init_params(key, cat_cardinalities, num_numeric_features, n_embed,
                hidden_sizes, output_size):
    keys = jax.random.split(
        key, len(cat_cardinalities) + 2 * (len(hidden_sizes) + 1))
    ki = iter(range(len(keys)))

    # Embedding tables: N(0, 1) like nn.Embedding default.
    embed_tables = [
        jax.random.normal(keys[next(ki)], (card, n_embed), dtype=jnp.float32)
        for card in cat_cardinalities
    ]

    input_size = len(cat_cardinalities) * n_embed + num_numeric_features
    sizes = [input_size] + list(hidden_sizes) + [output_size]
    linears = []
    for fan_in, fan_out in zip(sizes[:-1], sizes[1:]):
        bound = 1.0 / float(fan_in) ** 0.5
        w = jax.random.uniform(keys[next(ki)], (fan_out, fan_in),   # (out, in)
                               minval=-bound, maxval=bound, dtype=jnp.float32)
        b = jax.random.uniform(keys[next(ki)], (fan_out,),
                               minval=-bound, maxval=bound, dtype=jnp.float32)
        linears.append((w, b))
    return embed_tables, linears


def mlp_forward(x, embed_tables, prepared, n_cats, *, batch_tile=1024,
                training=False):
    if training:
        # TODO(synk): training-mode dropout (random masking) is not implemented.
        raise NotImplementedError(
            "Pallas MLP kernel implements eval semantics only (dropout=identity).")
    # Glue: embedding lookups + concatenation (tiny gathers, plain JAX).
    x_cat = x[:, :n_cats].astype(jnp.int32)
    x_num = x[:, n_cats:]
    embedded = [tbl[x_cat[:, i]] for i, tbl in enumerate(embed_tables)]
    x_combined = jnp.concatenate(embedded + [x_num], axis=1)
    # Hot path: fused MLP in Pallas.
    return mlp_pallas(x_combined, prepared, batch_tile=batch_tile)


# ---------------------------------------------------------------------------
# Pure-JAX reference for a sanity check (float32 everywhere).
# ---------------------------------------------------------------------------
def mlp_ref(x, embed_tables, linears, n_cats):
    x_cat = x[:, :n_cats].astype(jnp.int32)
    x_num = x[:, n_cats:]
    embedded = [tbl[x_cat[:, i]] for i, tbl in enumerate(embed_tables)]
    h = jnp.concatenate(embedded + [x_num], axis=1)
    (w1, b1), (w2, b2), (w3, b3), (w4, b4) = linears
    h = jnp.maximum(h @ w1.T + b1, 0.0)
    h = jnp.maximum(h @ w2.T + b2, 0.0)
    h = jnp.maximum(h @ w3.T + b3, 0.0)
    return h @ w4.T + b4


if __name__ == "__main__":
    # Small, module-consistent configuration.
    cat_cardinalities = [10, 7, 5]          # 3 categorical features
    num_numeric_features = 20
    n_embed = 4
    hidden_sizes = [512, 256, 128]
    output_size = 1
    n_cats = len(cat_cardinalities)

    key = jax.random.PRNGKey(0)
    k_params, k_data = jax.random.split(key)
    embed_tables, linears = init_params(
        k_params, cat_cardinalities, num_numeric_features, n_embed,
        hidden_sizes, output_size)

    # Pre-cast parameters ONCE (not per forward call).
    prepared_f32 = prepare_mlp_params(linears, compute_dtype=jnp.float32)
    prepared_bf16 = prepare_mlp_params(linears, compute_dtype=jnp.bfloat16)

    def make_x(k, batch):
        kc, kn = jax.random.split(k)
        cat_cols = [
            jax.random.randint(jax.random.fold_in(kc, i), (batch, 1), 0, card)
            .astype(jnp.float32)
            for i, card in enumerate(cat_cardinalities)
        ]
        num_cols = jax.random.normal(kn, (batch, num_numeric_features),
                                     dtype=jnp.float32)
        return jnp.concatenate(cat_cols + [num_cols], axis=1)

    # 1) Small batch (exercises the small-batch tile clamp), f32 compute path.
    x_small = make_x(jax.random.fold_in(k_data, 0), 8)           # (8, 23)
    ref_small = mlp_ref(x_small, embed_tables, linears, n_cats)
    out_f32 = jax.block_until_ready(
        mlp_forward(x_small, embed_tables, prepared_f32, n_cats))
    assert out_f32.shape == (8, output_size)
    assert jnp.allclose(out_f32, ref_small, atol=2e-4, rtol=2e-4), \
        "f32 kernel mismatch vs reference"

    # 2) Same batch, bf16 compute path (MXU-peak configuration).
    out_bf16 = jax.block_until_ready(
        mlp_forward(x_small, embed_tables, prepared_bf16, n_cats))
    assert out_bf16.shape == (8, output_size)
    assert jnp.allclose(out_bf16, ref_small, atol=5e-2, rtol=5e-2), \
        "bf16 kernel mismatch vs reference"

    # 3) Non-multiple batch: exercises zero-padding + the >=2-tile split.
    x_mid = make_x(jax.random.fold_in(k_data, 1), 300)           # (300, 23)
    ref_mid = mlp_ref(x_mid, embed_tables, linears, n_cats)
    out_mid = jax.block_until_ready(
        mlp_forward(x_mid, embed_tables, prepared_bf16, n_cats))
    assert out_mid.shape == (300, output_size)
    assert jnp.allclose(out_mid, ref_mid, atol=5e-2, rtol=5e-2), \
        "bf16 kernel (padded multi-tile) mismatch vs reference"

    print("KERNEL_OK")
</pallas_src>

<mosaic_0001>
module attributes {stable_mosaic.version = 11 : i64} {
  func.func @_mlp_kernel(%arg0: i32, %arg1: memref<128x32xf32, #tpu.memory_space<vmem>>, %arg2: memref<512x32xf32, #tpu.memory_space<vmem>>, %arg3: memref<512x1xf32, #tpu.memory_space<vmem>>, %arg4: memref<256x512xf32, #tpu.memory_space<vmem>>, %arg5: memref<256x1xf32, #tpu.memory_space<vmem>>, %arg6: memref<128x256xf32, #tpu.memory_space<vmem>>, %arg7: memref<128x1xf32, #tpu.memory_space<vmem>>, %arg8: memref<128x1xf32, #tpu.memory_space<vmem>>, %arg9: memref<1x1xf32, #tpu.memory_space<vmem>>, %arg10: memref<1x128xf32, #tpu.memory_space<vmem>>) attributes {dimension_semantics = [#tpu.dimension_semantics<parallel>], iteration_bounds = array<i64: 1>, scalar_prefetch = 0 : i64, scratch_operands = 0 : i64, tpu.core_type = #tpu.core_type<tc>, window_params = [{transform_indices = @transform_0, window_bounds = array<i64: 128, 32>}, {pipeline_mode = #tpu.pipeline_mode<synchronous>, transform_indices = @transform_1, window_bounds = array<i64: 512, 32>}, {pipeline_mode = #tpu.pipeline_mode<synchronous>, transform_indices = @transform_2, window_bounds = array<i64: 512, 1>}, {pipeline_mode = #tpu.pipeline_mode<synchronous>, transform_indices = @transform_3, window_bounds = array<i64: 256, 512>}, {pipeline_mode = #tpu.pipeline_mode<synchronous>, transform_indices = @transform_4, window_bounds = array<i64: 256, 1>}, {pipeline_mode = #tpu.pipeline_mode<synchronous>, transform_indices = @transform_5, window_bounds = array<i64: 128, 256>}, {pipeline_mode = #tpu.pipeline_mode<synchronous>, transform_indices = @transform_6, window_bounds = array<i64: 128, 1>}, {pipeline_mode = #tpu.pipeline_mode<synchronous>, transform_indices = @transform_7, window_bounds = array<i64: 128, 1>}, {pipeline_mode = #tpu.pipeline_mode<synchronous>, transform_indices = @transform_8, window_bounds = array<i64: 1, 1>}, {transform_indices = @transform_9, window_bounds = array<i64: 1, 128>}]} {
    %c0 = arith.constant 0 : index
    %c0_0 = arith.constant 0 : index
    %0 = vector.load %arg1[%c0, %c0_0] : memref<128x32xf32, #tpu.memory_space<vmem>>, vector<128x32xf32>
    %c0_1 = arith.constant 0 : index
    %c0_2 = arith.constant 0 : index
    %1 = vector.load %arg2[%c0_1, %c0_2] : memref<512x32xf32, #tpu.memory_space<vmem>>, vector<512x32xf32>
    %cst = arith.constant dense<0.000000e+00> : vector<512x128xf32>
    %2 = tpu.matmul %1, %0, %cst {dimension_numbers = #tpu.dot_dimension_numbers<[1], [1], [0], [0], [0, 0, 1, 0], [], []>} : vector<512x32xf32>, vector<128x32xf32>, vector<512x128xf32> -> vector<512x128xf32>
    %c0_3 = arith.constant 0 : index
    %c0_4 = arith.constant 0 : index
    %3 = vector.load %arg3[%c0_3, %c0_4] : memref<512x1xf32, #tpu.memory_space<vmem>>, vector<512x1xf32>
    %4 = vector.broadcast %3 : vector<512x1xf32> to vector<512x128xf32>
    %5 = arith.addf %2, %4 : vector<512x128xf32>
    %cst_5 = arith.constant 0.000000e+00 : f32
    %6 = vector.broadcast %cst_5 : f32 to vector<512x128xf32>
    %7 = arith.maximumf %5, %6 : vector<512x128xf32>
    %c0_6 = arith.constant 0 : index
    %c0_7 = arith.constant 0 : index
    %8 = vector.load %arg4[%c0_6, %c0_7] : memref<256x512xf32, #tpu.memory_space<vmem>>, vector<256x512xf32>
    %cst_8 = arith.constant dense<0.000000e+00> : vector<256x128xf32>
    %9 = tpu.matmul %8, %7, %cst_8 {dimension_numbers = #tpu.dot_dimension_numbers<[1], [0], [0], [1], [0, 0, 1, 1], [], []>} : vector<256x512xf32>, vector<512x128xf32>, vector<256x128xf32> -> vector<256x128xf32>
    %c0_9 = arith.constant 0 : index
    %c0_10 = arith.constant 0 : index
    %10 = vector.load %arg5[%c0_9, %c0_10] : memref<256x1xf32, #tpu.memory_space<vmem>>, vector<256x1xf32>
    %11 = vector.broadcast %10 : vector<256x1xf32> to vector<256x128xf32>
    %12 = arith.addf %9, %11 : vector<256x128xf32>
    %cst_11 = arith.constant 0.000000e+00 : f32
    %13 = vector.broadcast %cst_11 : f32 to vector<256x128xf32>
    %14 = arith.maximumf %12, %13 : vector<256x128xf32>
    %c0_12 = arith.constant 0 : index
    %c0_13 = arith.constant 0 : index
    %15 = vector.load %arg6[%c0_12, %c0_13] : memref<128x256xf32, #tpu.memory_space<vmem>>, vector<128x256xf32>
    %cst_14 = arith.constant dense<0.000000e+00> : vector<128x128xf32>
    %16 = tpu.matmul %15, %14, %cst_14 {dimension_numbers = #tpu.dot_dimension_numbers<[1], [0], [0], [1], [0, 0, 1, 1], [], []>} : vector<128x256xf32>, vector<256x128xf32>, vector<128x128xf32> -> vector<128x128xf32>
    %c0_15 = arith.constant 0 : index
    %c0_16 = arith.constant 0 : index
    %17 = vector.load %arg7[%c0_15, %c0_16] : memref<128x1xf32, #tpu.memory_space<vmem>>, vector<128x1xf32>
    %18 = vector.broadcast %17 : vector<128x1xf32> to vector<128x128xf32>
    %19 = arith.addf %16, %18 : vector<128x128xf32>
    %cst_17 = arith.constant 0.000000e+00 : f32
    %20 = vector.broadcast %cst_17 : f32 to vector<128x128xf32>
    %21 = arith.maximumf %19, %20 : vector<128x128xf32>
    %c0_18 = arith.constant 0 : index
    %c0_19 = arith.constant 0 : index
    %22 = vector.load %arg8[%c0_18, %c0_19] : memref<128x1xf32, #tpu.memory_space<vmem>>, vector<128x1xf32>
    %23 = vector.broadcast %22 : vector<128x1xf32> to vector<128x128xf32>
    %24 = arith.mulf %21, %23 : vector<128x128xf32>
    %cst_20 = arith.constant dense<0.000000e+00> : vector<128xf32>
    %25 = vector.multi_reduction <add>, %24, %cst_20 [0] : vector<128x128xf32> to vector<128xf32>
    %26 = vector.shape_cast %25 : vector<128xf32> to vector<1x128xf32>
    %c0_21 = arith.constant 0 : index
    %c0_22 = arith.constant 0 : index
    %27 = vector.load %arg9[%c0_21, %c0_22] : memref<1x1xf32, #tpu.memory_space<vmem>>, vector<1x1xf32>
    %28 = vector.broadcast %27 : vector<1x1xf32> to vector<1x128xf32>
    %29 = arith.addf %26, %28 : vector<1x128xf32>
    %c0_23 = arith.constant 0 : index
    %c0_24 = arith.constant 0 : index
    %30 = vector.load %arg10[%c0_23, %c0_24] : memref<1x128xf32, #tpu.memory_space<vmem>>, vector<1x128xf32>
    tpu.vector_store %arg10[%c0_23, %c0_24], %29 {strides = array<i32>} : memref<1x128xf32, #tpu.memory_space<vmem>>, vector<1x128xf32>,
    return
  }
  func.func @transform_0(%arg0: i32) -> (i32, i32) {
    %c0_i32 = arith.constant 0 : i32
    %c0_i32_0 = arith.constant 0 : i32
    return %arg0, %c0_i32 : i32, i32
  }
  func.func @transform_1(%arg0: i32) -> (i32, i32) {
    %c0_i32 = arith.constant 0 : i32
    %c0_i32_0 = arith.constant 0 : i32
    %c0_i32_1 = arith.constant 0 : i32
    return %c0_i32, %c0_i32_0 : i32, i32
  }
  func.func @transform_2(%arg0: i32) -> (i32, i32) {
    %c0_i32 = arith.constant 0 : i32
    %c0_i32_0 = arith.constant 0 : i32
    %c0_i32_1 = arith.constant 0 : i32
    return %c0_i32, %c0_i32_0 : i32, i32
  }
  func.func @transform_3(%arg0: i32) -> (i32, i32) {
    %c0_i32 = arith.constant 0 : i32
    %c0_i32_0 = arith.constant 0 : i32
    %c0_i32_1 = arith.constant 0 : i32
    return %c0_i32, %c0_i32_0 : i32, i32
  }
  func.func @transform_4(%arg0: i32) -> (i32, i32) {
    %c0_i32 = arith.constant 0 : i32
    %c0_i32_0 = arith.constant 0 : i32
    %c0_i32_1 = arith.constant 0 : i32
    return %c0_i32, %c0_i32_0 : i32, i32
  }
  func.func @transform_5(%arg0: i32) -> (i32, i32) {
    %c0_i32 = arith.constant 0 : i32
    %c0_i32_0 = arith.constant 0 : i32
    %c0_i32_1 = arith.constant 0 : i32
    return %c0_i32, %c0_i32_0 : i32, i32
  }
  func.func @transform_6(%arg0: i32) -> (i32, i32) {
    %c0_i32 = arith.constant 0 : i32
    %c0_i32_0 = arith.constant 0 : i32
    %c0_i32_1 = arith.constant 0 : i32
    return %c0_i32, %c0_i32_0 : i32, i32
  }
  func.func @transform_7(%arg0: i32) -> (i32, i32) {
    %c0_i32 = arith.constant 0 : i32
    %c0_i32_0 = arith.constant 0 : i32
    %c0_i32_1 = arith.constant 0 : i32
    return %c0_i32, %c0_i32_0 : i32, i32
  }
  func.func @transform_8(%arg0: i32) -> (i32, i32) {
    %c0_i32 = arith.constant 0 : i32
    %c0_i32_0 = arith.constant 0 : i32
    %c0_i32_1 = arith.constant 0 : i32
    return %c0_i32, %c0_i32_0 : i32, i32
  }
  func.func @transform_9(%arg0: i32) -> (i32, i32) {
    %c0_i32 = arith.constant 0 : i32
    %c0_i32_0 = arith.constant 0 : i32
    return %c0_i32, %arg0 : i32, i32
  }
}

</mosaic_0001>

<llo_original>
// kernel: tpu_custom_call.1
$region0: #{tpu_custom_call.1}
  #allocation0 [shape = 'u32[]', space=smem, size = 0x4, offset = 0x4, fixed_abs, tag = 'smem constant byte address 0x4 - core index']
  #allocation1 [shape = 'u32[72,128]{1,0:T(1,128)}', space=vmem, size = 0x9000, scoped, tag = 'internal scratch']
  #allocation2 [shape = 'f32[1,1]{1,0:T(1,128)S(1)}', space=vmem, size = 0x200, scoped, tag = 'scoped memory for tpu_custom_call.1']
  %s0 = inlined_call_operand.vmem [shape: f32[128,32], index: 0, kind: input, shape index: {}]
  %s1 = inlined_call_operand.vmem [shape: f32[512,32], index: 1, kind: input, shape index: {}]
  %s2 = inlined_call_operand.vmem [shape: f32[512,1], index: 2, kind: input, shape index: {}]
  %s3 = inlined_call_operand.vmem [shape: f32[256,512], index: 3, kind: input, shape index: {}]
  %s4 = inlined_call_operand.vmem [shape: f32[256,1], index: 4, kind: input, shape index: {}]
  %s5 = inlined_call_operand.vmem [shape: f32[128,256], index: 5, kind: input, shape index: {}]
  %s6 = inlined_call_operand.vmem [shape: f32[128,1], index: 6, kind: input, shape index: {}]
  %s7 = inlined_call_operand.vmem [shape: f32[128,1], index: 7, kind: input, shape index: {}]
  %s8 = inlined_call_operand.<no memory space> [shape: f32[1,1], index: 8, kind: input, shape index: {}]
  %s9 = inlined_call_operand.hbm [shape: f32[1,128], index: 9, kind: output, shape index: {}]
  %s10 = sld [smem:[#allocation0]]
  $region46: #{tpu_custom_call.1} parent=0
    _
  %s12 = ssub.s32 1, %s10
  %s13 = scalar_select 0, %s12, %s10
  %v14 = vstv %s8
  %15 = vst [vmem:[#allocation2] sm:$0x1] %v14
  $region1: #{tpu_custom_call.1} parent=0
    #allocation3 [shape = 'u8[512]{0}', space=vmem, size = 0x400, scoped, tag = 'output window, operand 0, single buffered']
    #allocation4 [shape = 's32[1]{0}', space=sflag, size = 0x4, scoped, tag = 'scoped memory for tpu_custom_call.1']
    %16 = vsyncpa [#allocation4], 0
    // Predicated region
    $region2: #{tpu_custom_call.1} parent=1 // pred_check
      _
    $region3: #{tpu_custom_call.1} parent=1 // pred_check_branch
      %18 = sbr.rel (0) target = $region5
    $region4: #{tpu_custom_call.1} parent=1 // pred_region
      _
    $region5: #{tpu_custom_call.1} parent=1 // pred_fallthru
      _
    // Predicated region
    $region6: #{tpu_custom_call.1} parent=1 // pred_check
      _
    $region7: #{tpu_custom_call.1} parent=1 // pred_check_branch
      %20 = sbr.rel (0) target = $region9
    $region8: #{tpu_custom_call.1} parent=1 // pred_region
      _
    $region9: #{tpu_custom_call.1} parent=1 // pred_fallthru
      _
    // Predicated region
    $region10: #{tpu_custom_call.1} parent=1 // pred_check
      _
    $region11: #{tpu_custom_call.1} parent=1 // pred_check_branch
      %22 = sbr.rel (0) target = $region13
    $region12: #{tpu_custom_call.1} parent=1 // pred_region
      _
    $region13: #{tpu_custom_call.1} parent=1 // pred_fallthru
      _
    // Predicated region
    $region14: #{tpu_custom_call.1} parent=1 // pred_check
      _
    $region15: #{tpu_custom_call.1} parent=1 // pred_check_branch
      %24 = sbr.rel (0) target = $region17
    $region16: #{tpu_custom_call.1} parent=1 // pred_region
      _
    $region17: #{tpu_custom_call.1} parent=1 // pred_fallthru
      _
    // Predicated region
    $region18: #{tpu_custom_call.1} parent=1 // pred_check
      _
    $region19: #{tpu_custom_call.1} parent=1 // pred_check_branch
      %26 = sbr.rel (0) target = $region21
    $region20: #{tpu_custom_call.1} parent=1 // pred_region
      _
    $region21: #{tpu_custom_call.1} parent=1 // pred_fallthru
      _
    // Predicated region
    $region22: #{tpu_custom_call.1} parent=1 // pred_check
      _
    $region23: #{tpu_custom_call.1} parent=1 // pred_check_branch
      %28 = sbr.rel (0) target = $region25
    $region24: #{tpu_custom_call.1} parent=1 // pred_region
      _
    $region25: #{tpu_custom_call.1} parent=1 // pred_fallthru
      _
    // Predicated region
    $region26: #{tpu_custom_call.1} parent=1 // pred_check
      _
    $region27: #{tpu_custom_call.1} parent=1 // pred_check_branch
      %30 = sbr.rel (0) target = $region29
    $region28: #{tpu_custom_call.1} parent=1 // pred_region
      _
    $region29: #{tpu_custom_call.1} parent=1 // pred_fallthru
      _
    // Predicated region
    $region30: #{tpu_custom_call.1} parent=1 // pred_check
      _
    $region31: #{tpu_custom_call.1} parent=1 // pred_check_branch
      %32 = sbr.rel (0) target = $region33
    $region32: #{tpu_custom_call.1} parent=1 // pred_region
      _
    $region33: #{tpu_custom_call.1} parent=1 // pred_fallthru
      _
    // Predicated region
    $region34: #{tpu_custom_call.1} parent=1 // pred_check
      _
    $region35: #{tpu_custom_call.1} parent=1 // pred_check_branch
      %34 = sbr.rel (0) target = $region37
    $region36: #{tpu_custom_call.1} parent=1 // pred_region
      _
    $region37: #{tpu_custom_call.1} parent=1 // pred_fallthru
      _
    %v35 = vld [vmem:[%s0] sm:$0xff]
    %v36 = vld [vmem:[%s0 + $0x8] sm:$0xff]
    %v37 = vld [vmem:[%s0 + $0x10] sm:$0xff]
    %v38 = vld [vmem:[%s0 + $0x18] sm:$0xff]
    %v39 = vld [vmem:[%s0 + $0x20] sm:$0xff]
    %v40 = vld [vmem:[%s0 + $0x28] sm:$0xff]
    %v41 = vld [vmem:[%s0 + $0x30] sm:$0xff]
    %v42 = vld [vmem:[%s0 + $0x38] sm:$0xff]
    %v43 = vld [vmem:[%s0 + $0x40] sm:$0xff]
    %v44 = vld [vmem:[%s0 + $0x48] sm:$0xff]
    %v45 = vld [vmem:[%s0 + $0x50] sm:$0xff]
    %v46 = vld [vmem:[%s0 + $0x58] sm:$0xff]
    %v47 = vld [vmem:[%s0 + $0x60] sm:$0xff]
    %v48 = vld [vmem:[%s0 + $0x68] sm:$0xff]
    %v49 = vld [vmem:[%s0 + $0x70] sm:$0xff]
    %v50 = vld [vmem:[%s0 + $0x78] sm:$0xff]
    %v51 = vld [vmem:[%s1] sm:$0xff]
    %v52 = vld [vmem:[%s1 + $0x8] sm:$0xff]
    %v53 = vld [vmem:[%s1 + $0x10] sm:$0xff]
    %v54 = vld [vmem:[%s1 + $0x18] sm:$0xff]
    %v55 = vld [vmem:[%s1 + $0x20] sm:$0xff]
    %v56 = vld [vmem:[%s1 + $0x28] sm:$0xff]
    %v57 = vld [vmem:[%s1 + $0x30] sm:$0xff]
    %v58 = vld [vmem:[%s1 + $0x38] sm:$0xff]
    %v59 = vld [vmem:[%s1 + $0x40] sm:$0xff]
    %v60 = vld [vmem:[%s1 + $0x48] sm:$0xff]
    %v61 = vld [vmem:[%s1 + $0x50] sm:$0xff]
    %v62 = vld [vmem:[%s1 + $0x58] sm:$0xff]
    %v63 = vld [vmem:[%s1 + $0x60] sm:$0xff]
    %v64 = vld [vmem:[%s1 + $0x68] sm:$0xff]
    %v65 = vld [vmem:[%s1 + $0x70] sm:$0xff]
    %v66 = vld [vmem:[%s1 + $0x78] sm:$0xff]
    %v67 = vld [vmem:[%s1 + $0x80] sm:$0xff]
    %v68 = vld [vmem:[%s1 + $0x88] sm:$0xff]
    %v69 = vld [vmem:[%s1 + $0x90] sm:$0xff]
    %v70 = vld [vmem:[%s1 + $0x98] sm:$0xff]
    %v71 = vld [vmem:[%s1 + $0xa0] sm:$0xff]
    %v72 = vld [vmem:[%s1 + $0xa8] sm:$0xff]
    %v73 = vld [vmem:[%s1 + $0xb0] sm:$0xff]
    %v74 = vld [vmem:[%s1 + $0xb8] sm:$0xff]
    %v75 = vld [vmem:[%s1 + $0xc0] sm:$0xff]
    %v76 = vld [vmem:[%s1 + $0xc8] sm:$0xff]
    %v77 = vld [vmem:[%s1 + $0xd0] sm:$0xff]
    %v78 = vld [vmem:[%s1 + $0xd8] sm:$0xff]
    %v79 = vld [vmem:[%s1 + $0xe0] sm:$0xff]
    %v80 = vld [vmem:[%s1 + $0xe8] sm:$0xff]
    %v81 = vld [vmem:[%s1 + $0xf0] sm:$0xff]
    %v82 = vld [vmem:[%s1 + $0xf8] sm:$0xff]
    %v83 = vld [vmem:[%s1 + $0x100] sm:$0xff]
    %v84 = vld [vmem:[%s1 + $0x108] sm:$0xff]
    %v85 = vld [vmem:[%s1 + $0x110] sm:$0xff]
    %v86 = vld [vmem:[%s1 + $0x118] sm:$0xff]
    %v87 = vld [vmem:[%s1 + $0x120] sm:$0xff]
    %v88 = vld [vmem:[%s1 + $0x128] sm:$0xff]
    %v89 = vld [vmem:[%s1 + $0x130] sm:$0xff]
    %v90 = vld [vmem:[%s1 + $0x138] sm:$0xff]
    %v91 = vld [vmem:[%s1 + $0x140] sm:$0xff]
    %v92 = vld [vmem:[%s1 + $0x148] sm:$0xff]
    %v93 = vld [vmem:[%s1 + $0x150] sm:$0xff]
    %v94 = vld [vmem:[%s1 + $0x158] sm:$0xff]
    %v95 = vld [vmem:[%s1 + $0x160] sm:$0xff]
    %v96 = vld [vmem:[%s1 + $0x168] sm:$0xff]
    %v97 = vld [vmem:[%s1 + $0x170] sm:$0xff]
    %v98 = vld [vmem:[%s1 + $0x178] sm:$0xff]
    %v99 = vld [vmem:[%s1 + $0x180] sm:$0xff]
    %v100 = vld [vmem:[%s1 + $0x188] sm:$0xff]
    %v101 = vld [vmem:[%s1 + $0x190] sm:$0xff]
    %v102 = vld [vmem:[%s1 + $0x198] sm:$0xff]
    %v103 = vld [vmem:[%s1 + $0x1a0] sm:$0xff]
    %v104 = vld [vmem:[%s1 + $0x1a8] sm:$0xff]
    %v105 = vld [vmem:[%s1 + $0x1b0] sm:$0xff]
    %v106 = vld [vmem:[%s1 + $0x1b8] sm:$0xff]
    %v107 = vld [vmem:[%s1 + $0x1c0] sm:$0xff]
    %v108 = vld [vmem:[%s1 + $0x1c8] sm:$0xff]
    %v109 = vld [vmem:[%s1 + $0x1d0] sm:$0xff]
    %v110 = vld [vmem:[%s1 + $0x1d8] sm:$0xff]
    %v111 = vld [vmem:[%s1 + $0x1e0] sm:$0xff]
    %v112 = vld [vmem:[%s1 + $0x1e8] sm:$0xff]
    %v113 = vld [vmem:[%s1 + $0x1f0] sm:$0xff]
    %v114 = vld [vmem:[%s1 + $0x1f8] sm:$0xff]
    %v115 = vld [vmem:[%s2] sm:$0xff]
    %v116 = vld [vmem:[%s2 + $0x8] sm:$0xff]
    %v117 = vld [vmem:[%s2 + $0x10] sm:$0xff]
    %v118 = vld [vmem:[%s2 + $0x18] sm:$0xff]
    %v119 = vld [vmem:[%s2 + $0x20] sm:$0xff]
    %v120 = vld [vmem:[%s2 + $0x28] sm:$0xff]
    %v121 = vld [vmem:[%s2 + $0x30] sm:$0xff]
    %v122 = vld [vmem:[%s2 + $0x38] sm:$0xff]
    %v123 = vld [vmem:[%s2 + $0x40] sm:$0xff]
    %v124 = vld [vmem:[%s2 + $0x48] sm:$0xff]
    %v125 = vld [vmem:[%s2 + $0x50] sm:$0xff]
    %v126 = vld [vmem:[%s2 + $0x58] sm:$0xff]
    %v127 = vld [vmem:[%s2 + $0x60] sm:$0xff]
    %v128 = vld [vmem:[%s2 + $0x68] sm:$0xff]
    %v129 = vld [vmem:[%s2 + $0x70] sm:$0xff]
    %v130 = vld [vmem:[%s2 + $0x78] sm:$0xff]
    %v131 = vld [vmem:[%s2 + $0x80] sm:$0xff]
    %v132 = vld [vmem:[%s2 + $0x88] sm:$0xff]
    %v133 = vld [vmem:[%s2 + $0x90] sm:$0xff]
    %v134 = vld [vmem:[%s2 + $0x98] sm:$0xff]
    %v135 = vld [vmem:[%s2 + $0xa0] sm:$0xff]
    %v136 = vld [vmem:[%s2 + $0xa8] sm:$0xff]
    %v137 = vld [vmem:[%s2 + $0xb0] sm:$0xff]
    %v138 = vld [vmem:[%s2 + $0xb8] sm:$0xff]
    %v139 = vld [vmem:[%s2 + $0xc0] sm:$0xff]
    %v140 = vld [vmem:[%s2 + $0xc8] sm:$0xff]
    %v141 = vld [vmem:[%s2 + $0xd0] sm:$0xff]
    %v142 = vld [vmem:[%s2 + $0xd8] sm:$0xff]
    %v143 = vld [vmem:[%s2 + $0xe0] sm:$0xff]
    %v144 = vld [vmem:[%s2 + $0xe8] sm:$0xff]
    %v145 = vld [vmem:[%s2 + $0xf0] sm:$0xff]
    %v146 = vld [vmem:[%s2 + $0xf8] sm:$0xff]
    %v147 = vld [vmem:[%s2 + $0x100] sm:$0xff]
    %v148 = vld [vmem:[%s2 + $0x108] sm:$0xff]
    %v149 = vld [vmem:[%s2 + $0x110] sm:$0xff]
    %v150 = vld [vmem:[%s2 + $0x118] sm:$0xff]
    %v151 = vld [vmem:[%s2 + $0x120] sm:$0xff]
    %v152 = vld [vmem:[%s2 + $0x128] sm:$0xff]
    %v153 = vld [vmem:[%s2 + $0x130] sm:$0xff]
    %v154 = vld [vmem:[%s2 + $0x138] sm:$0xff]
    %v155 = vld [vmem:[%s2 + $0x140] sm:$0xff]
    %v156 = vld [vmem:[%s2 + $0x148] sm:$0xff]
    %v157 = vld [vmem:[%s2 + $0x150] sm:$0xff]
    %v158 = vld [vmem:[%s2 + $0x158] sm:$0xff]
    %v159 = vld [vmem:[%s2 + $0x160] sm:$0xff]
    %v160 = vld [vmem:[%s2 + $0x168] sm:$0xff]
    %v161 = vld [vmem:[%s2 + $0x170] sm:$0xff]
    %v162 = vld [vmem:[%s2 + $0x178] sm:$0xff]
    %v163 = vld [vmem:[%s2 + $0x180] sm:$0xff]
    %v164 = vld [vmem:[%s2 + $0x188] sm:$0xff]
    %v165 = vld [vmem:[%s2 + $0x190] sm:$0xff]
    %v166 = vld [vmem:[%s2 + $0x198] sm:$0xff]
    %v167 = vld [vmem:[%s2 + $0x1a0] sm:$0xff]
    %v168 = vld [vmem:[%s2 + $0x1a8] sm:$0xff]
    %v169 = vld [vmem:[%s2 + $0x1b0] sm:$0xff]
    %v170 = vld [vmem:[%s2 + $0x1b8] sm:$0xff]
    %v171 = vld [vmem:[%s2 + $0x1c0] sm:$0xff]
    %v172 = vld [vmem:[%s2 + $0x1c8] sm:$0xff]
    %v173 = vld [vmem:[%s2 + $0x1d0] sm:$0xff]
    %v174 = vld [vmem:[%s2 + $0x1d8] sm:$0xff]
    %v175 = vld [vmem:[%s2 + $0x1e0] sm:$0xff]
    %v176 = vld [vmem:[%s2 + $0x1e8] sm:$0xff]
    %v177 = vld [vmem:[%s2 + $0x1f0] sm:$0xff]
    %v178 = vld [vmem:[%s2 + $0x1f8] sm:$0xff]
    %180 = vset.pattern.permute.xlu0 0
    %181 = vperm.xlu0 %180, %v115
    %v182 = vpop.permute.xlu0 %181
    %185 = vset.pattern.permute.xlu0 0
    %186 = vperm.xlu0 %185, %v116
    %v187 = vpop.permute.xlu0 %186
    %190 = vset.pattern.permute.xlu0 0
    %191 = vperm.xlu0 %190, %v117
    %v192 = vpop.permute.xlu0 %191
    %195 = vset.pattern.permute.xlu0 0
    %196 = vperm.xlu0 %195, %v118
    %v197 = vpop.permute.xlu0 %196
    %200 = vset.pattern.permute.xlu0 0
    %201 = vperm.xlu0 %200, %v119
    %v202 = vpop.permute.xlu0 %201
    %205 = vset.pattern.permute.xlu0 0
    %206 = vperm.xlu0 %205, %v120
    %v207 = vpop.permute.xlu0 %206
    %210 = vset.pattern.permute.xlu0 0
    %211 = vperm.xlu0 %210, %v121
    %v212 = vpop.permute.xlu0 %211
    %215 = vset.pattern.permute.xlu0 0
    %216 = vperm.xlu0 %215, %v122
    %v217 = vpop.permute.xlu0 %216
    %220 = vset.pattern.permute.xlu0 0
    %221 = vperm.xlu0 %220, %v123
    %v222 = vpop.permute.xlu0 %221
    %225 = vset.pattern.permute.xlu0 0
    %226 = vperm.xlu0 %225, %v124
    %v227 = vpop.permute.xlu0 %226
    %230 = vset.pattern.permute.xlu0 0
    %231 = vperm.xlu0 %230, %v125
    %v232 = vpop.permute.xlu0 %231
    %235 = vset.pattern.permute.xlu0 0
    %236 = vperm.xlu0 %235, %v126
    %v237 = vpop.permute.xlu0 %236
    %240 = vset.pattern.permute.xlu0 0
    %241 = vperm.xlu0 %240, %v127
    %v242 = vpop.permute.xlu0 %241
    %245 = vset.pattern.permute.xlu0 0
    %246 = vperm.xlu0 %245, %v128
    %v247 = vpop.permute.xlu0 %246
    %250 = vset.pattern.permute.xlu0 0
    %251 = vperm.xlu0 %250, %v129
    %v252 = vpop.permute.xlu0 %251
    %255 = vset.pattern.permute.xlu0 0
    %256 = vperm.xlu0 %255, %v130
    %v257 = vpop.permute.xlu0 %256
    %260 = vset.pattern.permute.xlu0 0
    %261 = vperm.xlu0 %260, %v131
    %v262 = vpop.permute.xlu0 %261
    %265 = vset.pattern.permute.xlu0 0
    %266 = vperm.xlu0 %265, %v132
    %v267 = vpop.permute.xlu0 %266
    %270 = vset.pattern.permute.xlu0 0
    %271 = vperm.xlu0 %270, %v133
    %v272 = vpop.permute.xlu0 %271
    %275 = vset.pattern.permute.xlu0 0
    %276 = vperm.xlu0 %275, %v134
    %v277 = vpop.permute.xlu0 %276
    %280 = vset.pattern.permute.xlu0 0
    %281 = vperm.xlu0 %280, %v135
    %v282 = vpop.permute.xlu0 %281
    %285 = vset.pattern.permute.xlu0 0
    %286 = vperm.xlu0 %285, %v136
    %v287 = vpop.permute.xlu0 %286
    %290 = vset.pattern.permute.xlu0 0
    %291 = vperm.xlu0 %290, %v137
    %v292 = vpop.permute.xlu0 %291
    %295 = vset.pattern.permute.xlu0 0
    %296 = vperm.xlu0 %295, %v138
    %v297 = vpop.permute.xlu0 %296
    %300 = vset.pattern.permute.xlu0 0
    %301 = vperm.xlu0 %300, %v139
    %v302 = vpop.permute.xlu0 %301
    %305 = vset.pattern.permute.xlu0 0
    %306 = vperm.xlu0 %305, %v140
    %v307 = vpop.permute.xlu0 %306
    %310 = vset.pattern.permute.xlu0 0
    %311 = vperm.xlu0 %310, %v141
    %v312 = vpop.permute.xlu0 %311
    %315 = vset.pattern.permute.xlu0 0
    %316 = vperm.xlu0 %315, %v142
    %v317 = vpop.permute.xlu0 %316
    %320 = vset.pattern.permute.xlu0 0
    %321 = vperm.xlu0 %320, %v143
    %v322 = vpop.permute.xlu0 %321
    %325 = vset.pattern.permute.xlu0 0
    %326 = vperm.xlu0 %325, %v144
    %v327 = vpop.permute.xlu0 %326
    %330 = vset.pattern.permute.xlu0 0
    %331 = vperm.xlu0 %330, %v145
    %v332 = vpop.permute.xlu0 %331
    %335 = vset.pattern.permute.xlu0 0
    %336 = vperm.xlu0 %335, %v146
    %v337 = vpop.permute.xlu0 %336
    %340 = vset.pattern.permute.xlu0 0
    %341 = vperm.xlu0 %340, %v147
    %v342 = vpop.permute.xlu0 %341
    %345 = vset.pattern.permute.xlu0 0
    %346 = vperm.xlu0 %345, %v148
    %v347 = vpop.permute.xlu0 %346
    %350 = vset.pattern.permute.xlu0 0
    %351 = vperm.xlu0 %350, %v149
    %v352 = vpop.permute.xlu0 %351
    %355 = vset.pattern.permute.xlu0 0
    %356 = vperm.xlu0 %355, %v150
    %v357 = vpop.permute.xlu0 %356
    %360 = vset.pattern.permute.xlu0 0
    %361 = vperm.xlu0 %360, %v151
    %v362 = vpop.permute.xlu0 %361
    %365 = vset.pattern.permute.xlu0 0
    %366 = vperm.xlu0 %365, %v152
    %v367 = vpop.permute.xlu0 %366
    %370 = vset.pattern.permute.xlu0 0
    %371 = vperm.xlu0 %370, %v153
    %v372 = vpop.permute.xlu0 %371
    %375 = vset.pattern.permute.xlu0 0
    %376 = vperm.xlu0 %375, %v154
    %v377 = vpop.permute.xlu0 %376
    %380 = vset.pattern.permute.xlu0 0
    %381 = vperm.xlu0 %380, %v155
    %v382 = vpop.permute.xlu0 %381
    %385 = vset.pattern.permute.xlu0 0
    %386 = vperm.xlu0 %385, %v156
    %v387 = vpop.permute.xlu0 %386
    %390 = vset.pattern.permute.xlu0 0
    %391 = vperm.xlu0 %390, %v157
    %v392 = vpop.permute.xlu0 %391
    %395 = vset.pattern.permute.xlu0 0
    %396 = vperm.xlu0 %395, %v158
    %v397 = vpop.permute.xlu0 %396
    %400 = vset.pattern.permute.xlu0 0
    %401 = vperm.xlu0 %400, %v159
    %v402 = vpop.permute.xlu0 %401
    %405 = vset.pattern.permute.xlu0 0
    %406 = vperm.xlu0 %405, %v160
    %v407 = vpop.permute.xlu0 %406
    %410 = vset.pattern.permute.xlu0 0
    %411 = vperm.xlu0 %410, %v161
    %v412 = vpop.permute.xlu0 %411
    %415 = vset.pattern.permute.xlu0 0
    %416 = vperm.xlu0 %415, %v162
    %v417 = vpop.permute.xlu0 %416
    %420 = vset.pattern.permute.xlu0 0
    %421 = vperm.xlu0 %420, %v163
    %v422 = vpop.permute.xlu0 %421
    %425 = vset.pattern.permute.xlu0 0
    %426 = vperm.xlu0 %425, %v164
    %v427 = vpop.permute.xlu0 %426
    %430 = vset.pattern.permute.xlu0 0
    %431 = vperm.xlu0 %430, %v165
    %v432 = vpop.permute.xlu0 %431
    %435 = vset.pattern.permute.xlu0 0
    %436 = vperm.xlu0 %435, %v166
    %v437 = vpop.permute.xlu0 %436
    %440 = vset.pattern.permute.xlu0 0
    %441 = vperm.xlu0 %440, %v167
    %v442 = vpop.permute.xlu0 %441
    %445 = vset.pattern.permute.xlu0 0
    %446 = vperm.xlu0 %445, %v168
    %v447 = vpop.permute.xlu0 %446
    %450 = vset.pattern.permute.xlu0 0
    %451 = vperm.xlu0 %450, %v169
    %v452 = vpop.permute.xlu0 %451
    %455 = vset.pattern.permute.xlu0 0
    %456 = vperm.xlu0 %455, %v170
    %v457 = vpop.permute.xlu0 %456
    %460 = vset.pattern.permute.xlu0 0
    %461 = vperm.xlu0 %460, %v171
    %v462 = vpop.permute.xlu0 %461
    %465 = vset.pattern.permute.xlu0 0
    %466 = vperm.xlu0 %465, %v172
    %v467 = vpop.permute.xlu0 %466
    %470 = vset.pattern.permute.xlu0 0
    %471 = vperm.xlu0 %470, %v173
    %v472 = vpop.permute.xlu0 %471
    %475 = vset.pattern.permute.xlu0 0
    %476 = vperm.xlu0 %475, %v174
    %v477 = vpop.permute.xlu0 %476
    %480 = vset.pattern.permute.xlu0 0
    %481 = vperm.xlu0 %480, %v175
    %v482 = vpop.permute.xlu0 %481
    %485 = vset.pattern.permute.xlu0 0
    %486 = vperm.xlu0 %485, %v176
    %v487 = vpop.permute.xlu0 %486
    %490 = vset.pattern.permute.xlu0 0
    %491 = vperm.xlu0 %490, %v177
    %v492 = vpop.permute.xlu0 %491
    %495 = vset.pattern.permute.xlu0 0
    %496 = vperm.xlu0 %495, %v178
    %v497 = vpop.permute.xlu0 %496
    %vm499 = vcmask 261120
    %v501 = vsel %vm499, %v51, 0
    %v504 = vsel %vm499, %v52, 0
    %v507 = vsel %vm499, %v53, 0
    %v510 = vsel %vm499, %v54, 0
    %v513 = vsel %vm499, %v55, 0
    %v516 = vsel %vm499, %v56, 0
    %v519 = vsel %vm499, %v57, 0
    %v522 = vsel %vm499, %v58, 0
    %v525 = vsel %vm499, %v59, 0
    %v528 = vsel %vm499, %v60, 0
    %v531 = vsel %vm499, %v61, 0
    %v534 = vsel %vm499, %v62, 0
    %v537 = vsel %vm499, %v63, 0
    %v540 = vsel %vm499, %v64, 0
    %v543 = vsel %vm499, %v65, 0
    %v546 = vsel %vm499, %v66, 0
    %v549 = vsel %vm499, %v67, 0
    %v552 = vsel %vm499, %v68, 0
    %v555 = vsel %vm499, %v69, 0
    %v558 = vsel %vm499, %v70, 0
    %v561 = vsel %vm499, %v71, 0
    %v564 = vsel %vm499, %v72, 0
    %v567 = vsel %vm499, %v73, 0
    %v570 = vsel %vm499, %v74, 0
    %v573 = vsel %vm499, %v75, 0
    %v576 = vsel %vm499, %v76, 0
    %v579 = vsel %vm499, %v77, 0
    %v582 = vsel %vm499, %v78, 0
    %v585 = vsel %vm499, %v79, 0
    %v588 = vsel %vm499, %v80, 0
    %v591 = vsel %vm499, %v81, 0
    %v594 = vsel %vm499, %v82, 0
    %v597 = vsel %vm499, %v83, 0
    %v600 = vsel %vm499, %v84, 0
    %v603 = vsel %vm499, %v85, 0
    %v606 = vsel %vm499, %v86, 0
    %v609 = vsel %vm499, %v87, 0
    %v612 = vsel %vm499, %v88, 0
    %v615 = vsel %vm499, %v89, 0
    %v618 = vsel %vm499, %v90, 0
    %v621 = vsel %vm499, %v91, 0
    %v624 = vsel %vm499, %v92, 0
    %v627 = vsel %vm499, %v93, 0
    %v630 = vsel %vm499, %v94, 0
    %v633 = vsel %vm499, %v95, 0
    %v636 = vsel %vm499, %v96, 0
    %v639 = vsel %vm499, %v97, 0
    %v642 = vsel %vm499, %v98, 0
    %v645 = vsel %vm499, %v99, 0
    %v648 = vsel %vm499, %v100, 0
    %v651 = vsel %vm499, %v101, 0
    %v654 = vsel %vm499, %v102, 0
    %v657 = vsel %vm499, %v103, 0
    %v660 = vsel %vm499, %v104, 0
    %v663 = vsel %vm499, %v105, 0
    %v666 = vsel %vm499, %v106, 0
    %v669 = vsel %vm499, %v107, 0
    %v672 = vsel %vm499, %v108, 0
    %v675 = vsel %vm499, %v109, 0
    %v678 = vsel %vm499, %v110, 0
    %v681 = vsel %vm499, %v111, 0
    %v684 = vsel %vm499, %v112, 0
    %v687 = vsel %vm499, %v113, 0
    %v690 = vsel %vm499, %v114, 0
    %v693 = vsel %vm499, %v35, 0
    %v696 = vsel %vm499, %v36, 0
    %v699 = vsel %vm499, %v37, 0
    %v702 = vsel %vm499, %v38, 0
    %v705 = vsel %vm499, %v39, 0
    %v708 = vsel %vm499, %v40, 0
    %v711 = vsel %vm499, %v41, 0
    %v714 = vsel %vm499, %v42, 0
    %v717 = vsel %vm499, %v43, 0
    %v720 = vsel %vm499, %v44, 0
    %v723 = vsel %vm499, %v45, 0
    %v726 = vsel %vm499, %v46, 0
    %v729 = vsel %vm499, %v47, 0
    %v732 = vsel %vm499, %v48, 0
    %v735 = vsel %vm499, %v49, 0
    %v738 = vsel %vm499, %v50, 0
    %740 = vmatpush.xpose.msra.mxu0 %v738
    %741 = vmatpush.xpose.msra.mxu0 %v735
    %742 = vmatpush.xpose.msra.mxu0 %v732
    %743 = vmatpush.xpose.msra.mxu0 %v729
    %744 = vmatpush.xpose.msra.mxu0 %v726
    %745 = vmatpush.xpose.msra.mxu0 %v723
    %746 = vmatpush.xpose.msra.mxu0 %v720
    %747 = vmatpush.xpose.msra.mxu0 %v717
    %748 = vmatpush.xpose.msra.mxu0 %v714
    %749 = vmatpush.xpose.msra.mxu0 %v711
    %750 = vmatpush.xpose.msra.mxu0 %v708
    %751 = vmatpush.xpose.msra.mxu0 %v705
    %752 = vmatpush.xpose.msra.mxu0 %v702
    %753 = vmatpush.xpose.msra.mxu0 %v699
    %754 = vmatpush.xpose.msra.mxu0 %v696
    %755 = vmatpush.xpose.msra.mxu0 %v693
    %756 = vmatmul.f32.gmra.mxu0 %v501
    %v757 = vpop.f32.mrf.mxu0
    %v758 = vadd.f32 %v182, %v757
    %759 = vmatmul.f32.gmra.mxu0 %v504
    %v760 = vpop.f32.mrf.mxu0
    %v761 = vadd.f32 %v187, %v760
    %762 = vmatmul.f32.gmra.mxu0 %v507
    %v763 = vpop.f32.mrf.mxu0
    %v764 = vadd.f32 %v192, %v763
    %765 = vmatmul.f32.gmra.mxu0 %v510
    %v766 = vpop.f32.mrf.mxu0
    %v767 = vadd.f32 %v197, %v766
    %768 = vmatmul.f32.gmra.mxu0 %v513
    %v769 = vpop.f32.mrf.mxu0
    %v770 = vadd.f32 %v202, %v769
    %771 = vmatmul.f32.gmra.mxu0 %v516
    %v772 = vpop.f32.mrf.mxu0
    %v773 = vadd.f32 %v207, %v772
    %774 = vmatmul.f32.gmra.mxu0 %v519
    %v775 = vpop.f32.mrf.mxu0
    %v776 = vadd.f32 %v212, %v775
    %777 = vmatmul.f32.gmra.mxu0 %v522
    %v778 = vpop.f32.mrf.mxu0
    %v779 = vadd.f32 %v217, %v778
    %780 = vmatmul.f32.gmra.mxu0 %v525
    %v781 = vpop.f32.mrf.mxu0
    %v782 = vadd.f32 %v222, %v781
    %783 = vmatmul.f32.gmra.mxu0 %v528
    %v784 = vpop.f32.mrf.mxu0
    %v785 = vadd.f32 %v227, %v784
    %786 = vmatmul.f32.gmra.mxu0 %v531
    %v787 = vpop.f32.mrf.mxu0
    %v788 = vadd.f32 %v232, %v787
    %789 = vmatmul.f32.gmra.mxu0 %v534
    %v790 = vpop.f32.mrf.mxu0
    %v791 = vadd.f32 %v237, %v790
    %792 = vmatmul.f32.gmra.mxu0 %v537
    %v793 = vpop.f32.mrf.mxu0
    %v794 = vadd.f32 %v242, %v793
    %795 = vmatmul.f32.gmra.mxu0 %v540
    %v796 = vpop.f32.mrf.mxu0
    %v797 = vadd.f32 %v247, %v796
    %798 = vmatmul.f32.gmra.mxu0 %v543
    %v799 = vpop.f32.mrf.mxu0
    %v800 = vadd.f32 %v252, %v799
    %801 = vmatmul.f32.gmra.mxu0 %v546
    %v802 = vpop.f32.mrf.mxu0
    %v803 = vadd.f32 %v257, %v802
    %804 = vmatmul.f32.gmra.mxu0 %v549
    %v805 = vpop.f32.mrf.mxu0
    %v806 = vadd.f32 %v262, %v805
    %807 = vmatmul.f32.gmra.mxu0 %v552
    %v808 = vpop.f32.mrf.mxu0
    %v809 = vadd.f32 %v267, %v808
    %810 = vmatmul.f32.gmra.mxu0 %v555
    %v811 = vpop.f32.mrf.mxu0
    %v812 = vadd.f32 %v272, %v811
    %813 = vmatmul.f32.gmra.mxu0 %v558
    %v814 = vpop.f32.mrf.mxu0
    %v815 = vadd.f32 %v277, %v814
    %816 = vmatmul.f32.gmra.mxu0 %v561
    %v817 = vpop.f32.mrf.mxu0
    %v818 = vadd.f32 %v282, %v817
    %819 = vmatmul.f32.gmra.mxu0 %v564
    %v820 = vpop.f32.mrf.mxu0
    %v821 = vadd.f32 %v287, %v820
    %822 = vmatmul.f32.gmra.mxu0 %v567
    %v823 = vpop.f32.mrf.mxu0
    %v824 = vadd.f32 %v292, %v823
    %825 = vmatmul.f32.gmra.mxu0 %v570
    %v826 = vpop.f32.mrf.mxu0
    %v827 = vadd.f32 %v297, %v826
    %828 = vmatmul.f32.gmra.mxu0 %v573
    %v829 = vpop.f32.mrf.mxu0
    %v830 = vadd.f32 %v302, %v829
    %831 = vmatmul.f32.gmra.mxu0 %v576
    %v832 = vpop.f32.mrf.mxu0
    %v833 = vadd.f32 %v307, %v832
    %834 = vmatmul.f32.gmra.mxu0 %v579
    %v835 = vpop.f32.mrf.mxu0
    %v836 = vadd.f32 %v312, %v835
    %837 = vmatmul.f32.gmra.mxu0 %v582
    %v838 = vpop.f32.mrf.mxu0
    %v839 = vadd.f32 %v317, %v838
    %840 = vmatmul.f32.gmra.mxu0 %v585
    %v841 = vpop.f32.mrf.mxu0
    %v842 = vadd.f32 %v322, %v841
    %843 = vmatmul.f32.gmra.mxu0 %v588
    %v844 = vpop.f32.mrf.mxu0
    %v845 = vadd.f32 %v327, %v844
    %846 = vmatmul.f32.gmra.mxu0 %v591
    %v847 = vpop.f32.mrf.mxu0
    %v848 = vadd.f32 %v332, %v847
    %849 = vmatmul.f32.gmra.mxu0 %v594
    %v850 = vpop.f32.mrf.mxu0
    %v851 = vadd.f32 %v337, %v850
    %852 = vmatmul.f32.gmra.mxu0 %v597
    %v853 = vpop.f32.mrf.mxu0
    %v854 = vadd.f32 %v342, %v853
    %855 = vmatmul.f32.gmra.mxu0 %v600
    %v856 = vpop.f32.mrf.mxu0
    %v857 = vadd.f32 %v347, %v856
    %858 = vmatmul.f32.gmra.mxu0 %v603
    %v859 = vpop.f32.mrf.mxu0
    %v860 = vadd.f32 %v352, %v859
    %861 = vmatmul.f32.gmra.mxu0 %v606
    %v862 = vpop.f32.mrf.mxu0
    %v863 = vadd.f32 %v357, %v862
    %864 = vmatmul.f32.gmra.mxu0 %v609
    %v865 = vpop.f32.mrf.mxu0
    %v866 = vadd.f32 %v362, %v865
    %867 = vmatmul.f32.gmra.mxu0 %v612
    %v868 = vpop.f32.mrf.mxu0
    %v869 = vadd.f32 %v367, %v868
    %870 = vmatmul.f32.gmra.mxu0 %v615
    %v871 = vpop.f32.mrf.mxu0
    %v872 = vadd.f32 %v372, %v871
    %873 = vmatmul.f32.gmra.mxu0 %v618
    %v874 = vpop.f32.mrf.mxu0
    %v875 = vadd.f32 %v377, %v874
    %876 = vmatmul.f32.gmra.mxu0 %v621
    %v877 = vpop.f32.mrf.mxu0
    %v878 = vadd.f32 %v382, %v877
    %879 = vmatmul.f32.gmra.mxu0 %v624
    %v880 = vpop.f32.mrf.mxu0
    %v881 = vadd.f32 %v387, %v880
    %882 = vmatmul.f32.gmra.mxu0 %v627
    %v883 = vpop.f32.mrf.mxu0
    %v884 = vadd.f32 %v392, %v883
    %885 = vmatmul.f32.gmra.mxu0 %v630
    %v886 = vpop.f32.mrf.mxu0
    %v887 = vadd.f32 %v397, %v886
    %888 = vmatmul.f32.gmra.mxu0 %v633
    %v889 = vpop.f32.mrf.mxu0
    %v890 = vadd.f32 %v402, %v889
    %891 = vmatmul.f32.gmra.mxu0 %v636
    %v892 = vpop.f32.mrf.mxu0
    %v893 = vadd.f32 %v407, %v892
    %894 = vmatmul.f32.gmra.mxu0 %v639
    %v895 = vpop.f32.mrf.mxu0
    %v896 = vadd.f32 %v412, %v895
    %897 = vmatmul.f32.gmra.mxu0 %v642
    %v898 = vpop.f32.mrf.mxu0
    %v899 = vadd.f32 %v417, %v898
    %900 = vmatmul.f32.gmra.mxu0 %v645
    %v901 = vpop.f32.mrf.mxu0
    %v902 = vadd.f32 %v422, %v901
    %903 = vmatmul.f32.gmra.mxu0 %v648
    %v904 = vpop.f32.mrf.mxu0
    %v905 = vadd.f32 %v427, %v904
    %906 = vmatmul.f32.gmra.mxu0 %v651
    %v907 = vpop.f32.mrf.mxu0
    %v908 = vadd.f32 %v432, %v907
    %909 = vmatmul.f32.gmra.mxu0 %v654
    %v910 = vpop.f32.mrf.mxu0
    %v911 = vadd.f32 %v437, %v910
    %912 = vmatmul.f32.gmra.mxu0 %v657
    %v913 = vpop.f32.mrf.mxu0
    %v914 = vadd.f32 %v442, %v913
    %915 = vmatmul.f32.gmra.mxu0 %v660
    %v916 = vpop.f32.mrf.mxu0
    %v917 = vadd.f32 %v447, %v916
    %918 = vmatmul.f32.gmra.mxu0 %v663
    %v919 = vpop.f32.mrf.mxu0
    %v920 = vadd.f32 %v452, %v919
    %921 = vmatmul.f32.gmra.mxu0 %v666
    %v922 = vpop.f32.mrf.mxu0
    %v923 = vadd.f32 %v457, %v922
    %924 = vmatmul.f32.gmra.mxu0 %v669
    %v925 = vpop.f32.mrf.mxu0
    %v926 = vadd.f32 %v462, %v925
    %927 = vmatmul.f32.gmra.mxu0 %v672
    %v928 = vpop.f32.mrf.mxu0
    %v929 = vadd.f32 %v467, %v928
    %930 = vmatmul.f32.gmra.mxu0 %v675
    %v931 = vpop.f32.mrf.mxu0
    %v932 = vadd.f32 %v472, %v931
    %933 = vmatmul.f32.gmra.mxu0 %v678
    %v934 = vpop.f32.mrf.mxu0
    %v935 = vadd.f32 %v477, %v934
    %936 = vmatmul.f32.gmra.mxu0 %v681
    %v937 = vpop.f32.mrf.mxu0
    %v938 = vadd.f32 %v482, %v937
    %939 = vmatmul.f32.gmra.mxu0 %v684
    %v940 = vpop.f32.mrf.mxu0
    %v941 = vadd.f32 %v487, %v940
    %942 = vmatmul.f32.gmra.mxu0 %v687
    %v943 = vpop.f32.mrf.mxu0
    %v944 = vadd.f32 %v492, %v943
    %945 = vmatmul.f32.gmra.mxu0 %v690
    %v946 = vpop.f32.mrf.mxu0
    %v947 = vadd.f32 %v497, %v946
    %948 = vdwg.mxu0
    %v949 = vmax.f32 %v758, 0.0
    %v950 = vmax.f32 %v761, 0.0
    %v951 = vmax.f32 %v764, 0.0
    %v952 = vmax.f32 %v767, 0.0
    %v953 = vmax.f32 %v770, 0.0
    %v954 = vmax.f32 %v773, 0.0
    %v955 = vmax.f32 %v776, 0.0
    %v956 = vmax.f32 %v779, 0.0
    %v957 = vmax.f32 %v782, 0.0
    %v958 = vmax.f32 %v785, 0.0
    %v959 = vmax.f32 %v788, 0.0
    %v960 = vmax.f32 %v791, 0.0
    %v961 = vmax.f32 %v794, 0.0
    %v962 = vmax.f32 %v797, 0.0
    %v963 = vmax.f32 %v800, 0.0
    %v964 = vmax.f32 %v803, 0.0
    %v965 = vmax.f32 %v806, 0.0
    %v966 = vmax.f32 %v809, 0.0
    %v967 = vmax.f32 %v812, 0.0
    %v968 = vmax.f32 %v815, 0.0
    %v969 = vmax.f32 %v818, 0.0
    %v970 = vmax.f32 %v821, 0.0
    %v971 = vmax.f32 %v824, 0.0
    %v972 = vmax.f32 %v827, 0.0
    %v973 = vmax.f32 %v830, 0.0
    %v974 = vmax.f32 %v833, 0.0
    %v975 = vmax.f32 %v836, 0.0
    %v976 = vmax.f32 %v839, 0.0
    %v977 = vmax.f32 %v842, 0.0
    %v978 = vmax.f32 %v845, 0.0
    %v979 = vmax.f32 %v848, 0.0
    %v980 = vmax.f32 %v851, 0.0
    %v981 = vmax.f32 %v854, 0.0
    %v982 = vmax.f32 %v857, 0.0
    %v983 = vmax.f32 %v860, 0.0
    %v984 = vmax.f32 %v863, 0.0
    %v985 = vmax.f32 %v866, 0.0
    %v986 = vmax.f32 %v869, 0.0
    %v987 = vmax.f32 %v872, 0.0
    %v988 = vmax.f32 %v875, 0.0
    %v989 = vmax.f32 %v878, 0.0
    %v990 = vmax.f32 %v881, 0.0
    %v991 = vmax.f32 %v884, 0.0
    %v992 = vmax.f32 %v887, 0.0
    %v993 = vmax.f32 %v890, 0.0
    %v994 = vmax.f32 %v893, 0.0
    %v995 = vmax.f32 %v896, 0.0
    %v996 = vmax.f32 %v899, 0.0
    %v997 = vmax.f32 %v902, 0.0
    %v998 = vmax.f32 %v905, 0.0
    %v999 = vmax.f32 %v908, 0.0
    %v1000 = vmax.f32 %v911, 0.0
    %v1001 = vmax.f32 %v914, 0.0
    %v1002 = vmax.f32 %v917, 0.0
    %v1003 = vmax.f32 %v920, 0.0
    %v1004 = vmax.f32 %v923, 0.0
    %v1005 = vmax.f32 %v926, 0.0
    %v1006 = vmax.f32 %v929, 0.0
    %v1007 = vmax.f32 %v932, 0.0
    %v1008 = vmax.f32 %v935, 0.0
    %v1009 = vmax.f32 %v938, 0.0
    %v1010 = vmax.f32 %v941, 0.0
    %v1011 = vmax.f32 %v944, 0.0
    %v1012 = vmax.f32 %v947, 0.0
    %v1013 = vld [vmem:[%s3] sm:$0xff]
    %v1014 = vld [vmem:[%s3 + $0x8] sm:$0xff]
    %v1015 = vld [vmem:[%s3 + $0x10] sm:$0xff]
    %v1016 = vld [vmem:[%s3 + $0x18] sm:$0xff]
    %v1017 = vld [vmem:[%s3 + $0x20] sm:$0xff]
    %v1018 = vld [vmem:[%s3 + $0x28] sm:$0xff]
    %v1019 = vld [vmem:[%s3 + $0x30] sm:$0xff]
    %v1020 = vld [vmem:[%s3 + $0x38] sm:$0xff]
    %v1021 = vld [vmem:[%s3 + $0x40] sm:$0xff]
    %v1022 = vld [vmem:[%s3 + $0x48] sm:$0xff]
    %v1023 = vld [vmem:[%s3 + $0x50] sm:$0xff]
    %v1024 = vld [vmem:[%s3 + $0x58] sm:$0xff]
    %v1025 = vld [vmem:[%s3 + $0x60] sm:$0xff]
    %v1026 = vld [vmem:[%s3 + $0x68] sm:$0xff]
    %v1027 = vld [vmem:[%s3 + $0x70] sm:$0xff]
    %v1028 = vld [vmem:[%s3 + $0x78] sm:$0xff]
    %v1029 = vld [vmem:[%s3 + $0x80] sm:$0xff]
    %v1030 = vld [vmem:[%s3 + $0x88] sm:$0xff]
    %v1031 = vld [vmem:[%s3 + $0x90] sm:$0xff]
    %v1032 = vld [vmem:[%s3 + $0x98] sm:$0xff]
    %v1033 = vld [vmem:[%s3 + $0xa0] sm:$0xff]
    %v1034 = vld [vmem:[%s3 + $0xa8] sm:$0xff]
    %v1035 = vld [vmem:[%s3 + $0xb0] sm:$0xff]
    %v1036 = vld [vmem:[%s3 + $0xb8] sm:$0xff]
    %v1037 = vld [vmem:[%s3 + $0xc0] sm:$0xff]
    %v1038 = vld [vmem:[%s3 + $0xc8] sm:$0xff]
    %v1039 = vld [vmem:[%s3 + $0xd0] sm:$0xff]
    %v1040 = vld [vmem:[%s3 + $0xd8] sm:$0xff]
    %v1041 = vld [vmem:[%s3 + $0xe0] sm:$0xff]
    %v1042 = vld [vmem:[%s3 + $0xe8] sm:$0xff]
    %v1043 = vld [vmem:[%s3 + $0xf0] sm:$0xff]
    %v1044 = vld [vmem:[%s3 + $0xf8] sm:$0xff]
    %v1045 = vld [vmem:[%s3 + $0x100] sm:$0xff]
    %v1046 = vld [vmem:[%s3 + $0x108] sm:$0xff]
    %v1047 = vld [vmem:[%s3 + $0x110] sm:$0xff]
    %v1048 = vld [vmem:[%s3 + $0x118] sm:$0xff]
    %v1049 = vld [vmem:[%s3 + $0x120] sm:$0xff]
    %v1050 = vld [vmem:[%s3 + $0x128] sm:$0xff]
    %v1051 = vld [vmem:[%s3 + $0x130] sm:$0xff]
    %v1052 = vld [vmem:[%s3 + $0x138] sm:$0xff]
    %v1053 = vld [vmem:[%s3 + $0x140] sm:$0xff]
    %v1054 = vld [vmem:[%s3 + $0x148] sm:$0xff]
    %v1055 = vld [vmem:[%s3 + $0x150] sm:$0xff]
    %v1056 = vld [vmem:[%s3 + $0x158] sm:$0xff]
    %v1057 = vld [vmem:[%s3 + $0x160] sm:$0xff]
    %v1058 = vld [vmem:[%s3 + $0x168] sm:$0xff]
    %v1059 = vld [vmem:[%s3 + $0x170] sm:$0xff]
    %v1060 = vld [vmem:[%s3 + $0x178] sm:$0xff]
    %v1061 = vld [vmem:[%s3 + $0x180] sm:$0xff]
    %v1062 = vld [vmem:[%s3 + $0x188] sm:$0xff]
    %v1063 = vld [vmem:[%s3 + $0x190] sm:$0xff]
    %v1064 = vld [vmem:[%s3 + $0x198] sm:$0xff]
    %v1065 = vld [vmem:[%s3 + $0x1a0] sm:$0xff]
    %v1066 = vld [vmem:[%s3 + $0x1a8] sm:$0xff]
    %v1067 = vld [vmem:[%s3 + $0x1b0] sm:$0xff]
    %v1068 = vld [vmem:[%s3 + $0x1b8] sm:$0xff]
    %v1069 = vld [vmem:[%s3 + $0x1c0] sm:$0xff]
    %v1070 = vld [vmem:[%s3 + $0x1c8] sm:$0xff]
    %v1071 = vld [vmem:[%s3 + $0x1d0] sm:$0xff]
    %v1072 = vld [vmem:[%s3 + $0x1d8] sm:$0xff]
    %v1073 = vld [vmem:[%s3 + $0x1e0] sm:$0xff]
    %v1074 = vld [vmem:[%s3 + $0x1e8] sm:$0xff]
    %v1075 = vld [vmem:[%s3 + $0x1f0] sm:$0xff]
    %v1076 = vld [vmem:[%s3 + $0x1f8] sm:$0xff]
    %v1077 = vld [vmem:[%s3 + $0x200] sm:$0xff]
    %v1078 = vld [vmem:[%s3 + $0x208] sm:$0xff]
    %v1079 = vld [vmem:[%s3 + $0x210] sm:$0xff]
    %v1080 = vld [vmem:[%s3 + $0x218] sm:$0xff]
    %v1081 = vld [vmem:[%s3 + $0x220] sm:$0xff]
    %v1082 = vld [vmem:[%s3 + $0x228] sm:$0xff]
    %v1083 = vld [vmem:[%s3 + $0x230] sm:$0xff]
    %v1084 = vld [vmem:[%s3 + $0x238] sm:$0xff]
    %v1085 = vld [vmem:[%s3 + $0x240] sm:$0xff]
    %v1086 = vld [vmem:[%s3 + $0x248] sm:$0xff]
    %v1087 = vld [vmem:[%s3 + $0x250] sm:$0xff]
    %v1088 = vld [vmem:[%s3 + $0x258] sm:$0xff]
    %v1089 = vld [vmem:[%s3 + $0x260] sm:$0xff]
    %v1090 = vld [vmem:[%s3 + $0x268] sm:$0xff]
    %v1091 = vld [vmem:[%s3 + $0x270] sm:$0xff]
    %v1092 = vld [vmem:[%s3 + $0x278] sm:$0xff]
    %v1093 = vld [vmem:[%s3 + $0x280] sm:$0xff]
    %v1094 = vld [vmem:[%s3 + $0x288] sm:$0xff]
    %v1095 = vld [vmem:[%s3 + $0x290] sm:$0xff]
    %v1096 = vld [vmem:[%s3 + $0x298] sm:$0xff]
    %v1097 = vld [vmem:[%s3 + $0x2a0] sm:$0xff]
    %v1098 = vld [vmem:[%s3 + $0x2a8] sm:$0xff]
    %v1099 = vld [vmem:[%s3 + $0x2b0] sm:$0xff]
    %v1100 = vld [vmem:[%s3 + $0x2b8] sm:$0xff]
    %v1101 = vld [vmem:[%s3 + $0x2c0] sm:$0xff]
    %v1102 = vld [vmem:[%s3 + $0x2c8] sm:$0xff]
    %v1103 = vld [vmem:[%s3 + $0x2d0] sm:$0xff]
    %v1104 = vld [vmem:[%s3 + $0x2d8] sm:$0xff]
    %v1105 = vld [vmem:[%s3 + $0x2e0] sm:$0xff]
    %v1106 = vld [vmem:[%s3 + $0x2e8] sm:$0xff]
    %v1107 = vld [vmem:[%s3 + $0x2f0] sm:$0xff]
    %v1108 = vld [vmem:[%s3 + $0x2f8] sm:$0xff]
    %v1109 = vld [vmem:[%s3 + $0x300] sm:$0xff]
    %v1110 = vld [vmem:[%s3 + $0x308] sm:$0xff]
    %v1111 = vld [vmem:[%s3 + $0x310] sm:$0xff]
    %v1112 = vld [vmem:[%s3 + $0x318] sm:$0xff]
    %v1113 = vld [vmem:[%s3 + $0x320] sm:$0xff]
    %v1114 = vld [vmem:[%s3 + $0x328] sm:$0xff]
    %v1115 = vld [vmem:[%s3 + $0x330] sm:$0xff]
    %v1116 = vld [vmem:[%s3 + $0x338] sm:$0xff]
    %v1117 = vld [vmem:[%s3 + $0x340] sm:$0xff]
    %v1118 = vld [vmem:[%s3 + $0x348] sm:$0xff]
    %v1119 = vld [vmem:[%s3 + $0x350] sm:$0xff]
    %v1120 = vld [vmem:[%s3 + $0x358] sm:$0xff]
    %v1121 = vld [vmem:[%s3 + $0x360] sm:$0xff]
    %v1122 = vld [vmem:[%s3 + $0x368] sm:$0xff]
    %v1123 = vld [vmem:[%s3 + $0x370] sm:$0xff]
    %v1124 = vld [vmem:[%s3 + $0x378] sm:$0xff]
    %v1125 = vld [vmem:[%s3 + $0x380] sm:$0xff]
    %v1126 = vld [vmem:[%s3 + $0x388] sm:$0xff]
    %v1127 = vld [vmem:[%s3 + $0x390] sm:$0xff]
    %v1128 = vld [vmem:[%s3 + $0x398] sm:$0xff]
    %v1129 = vld [vmem:[%s3 + $0x3a0] sm:$0xff]
    %v1130 = vld [vmem:[%s3 + $0x3a8] sm:$0xff]
    %v1131 = vld [vmem:[%s3 + $0x3b0] sm:$0xff]
    %v1132 = vld [vmem:[%s3 + $0x3b8] sm:$0xff]
    %v1133 = vld [vmem:[%s3 + $0x3c0] sm:$0xff]
    %v1134 = vld [vmem:[%s3 + $0x3c8] sm:$0xff]
    %v1135 = vld [vmem:[%s3 + $0x3d0] sm:$0xff]
    %v1136 = vld [vmem:[%s3 + $0x3d8] sm:$0xff]
    %v1137 = vld [vmem:[%s3 + $0x3e0] sm:$0xff]
    %v1138 = vld [vmem:[%s3 + $0x3e8] sm:$0xff]
    %v1139 = vld [vmem:[%s3 + $0x3f0] sm:$0xff]
    %v1140 = vld [vmem:[%s3 + $0x3f8] sm:$0xff]
    %v1141 = vld [vmem:[%s4] sm:$0xff]
    %v1142 = vld [vmem:[%s4 + $0x8] sm:$0xff]
    %v1143 = vld [vmem:[%s4 + $0x10] sm:$0xff]
    %v1144 = vld [vmem:[%s4 + $0x18] sm:$0xff]
    %v1145 = vld [vmem:[%s4 + $0x20] sm:$0xff]
    %v1146 = vld [vmem:[%s4 + $0x28] sm:$0xff]
    %v1147 = vld [vmem:[%s4 + $0x30] sm:$0xff]
    %v1148 = vld [vmem:[%s4 + $0x38] sm:$0xff]
    %v1149 = vld [vmem:[%s4 + $0x40] sm:$0xff]
    %v1150 = vld [vmem:[%s4 + $0x48] sm:$0xff]
    %v1151 = vld [vmem:[%s4 + $0x50] sm:$0xff]
    %v1152 = vld [vmem:[%s4 + $0x58] sm:$0xff]
    %v1153 = vld [vmem:[%s4 + $0x60] sm:$0xff]
    %v1154 = vld [vmem:[%s4 + $0x68] sm:$0xff]
    %v1155 = vld [vmem:[%s4 + $0x70] sm:$0xff]
    %v1156 = vld [vmem:[%s4 + $0x78] sm:$0xff]
    %v1157 = vld [vmem:[%s4 + $0x80] sm:$0xff]
    %v1158 = vld [vmem:[%s4 + $0x88] sm:$0xff]
    %v1159 = vld [vmem:[%s4 + $0x90] sm:$0xff]
    %v1160 = vld [vmem:[%s4 + $0x98] sm:$0xff]
    %v1161 = vld [vmem:[%s4 + $0xa0] sm:$0xff]
    %v1162 = vld [vmem:[%s4 + $0xa8] sm:$0xff]
    %v1163 = vld [vmem:[%s4 + $0xb0] sm:$0xff]
    %v1164 = vld [vmem:[%s4 + $0xb8] sm:$0xff]
    %v1165 = vld [vmem:[%s4 + $0xc0] sm:$0xff]
    %v1166 = vld [vmem:[%s4 + $0xc8] sm:$0xff]
    %v1167 = vld [vmem:[%s4 + $0xd0] sm:$0xff]
    %v1168 = vld [vmem:[%s4 + $0xd8] sm:$0xff]
    %v1169 = vld [vmem:[%s4 + $0xe0] sm:$0xff]
    %v1170 = vld [vmem:[%s4 + $0xe8] sm:$0xff]
    %v1171 = vld [vmem:[%s4 + $0xf0] sm:$0xff]
    %v1172 = vld [vmem:[%s4 + $0xf8] sm:$0xff]
    %1174 = vset.pattern.permute.xlu0 0
    %1175 = vperm.xlu0 %1174, %v1141
    %v1176 = vpop.permute.xlu0 %1175
    %1179 = vset.pattern.permute.xlu0 0
    %1180 = vperm.xlu0 %1179, %v1142
    %v1181 = vpop.permute.xlu0 %1180
    %1184 = vset.pattern.permute.xlu0 0
    %1185 = vperm.xlu0 %1184, %v1143
    %v1186 = vpop.permute.xlu0 %1185
    %1189 = vset.pattern.permute.xlu0 0
    %1190 = vperm.xlu0 %1189, %v1144
    %v1191 = vpop.permute.xlu0 %1190
    %1194 = vset.pattern.permute.xlu0 0
    %1195 = vperm.xlu0 %1194, %v1145
    %v1196 = vpop.permute.xlu0 %1195
    %1199 = vset.pattern.permute.xlu0 0
    %1200 = vperm.xlu0 %1199, %v1146
    %v1201 = vpop.permute.xlu0 %1200
    %1204 = vset.pattern.permute.xlu0 0
    %1205 = vperm.xlu0 %1204, %v1147
    %v1206 = vpop.permute.xlu0 %1205
    %1209 = vset.pattern.permute.xlu0 0
    %1210 = vperm.xlu0 %1209, %v1148
    %v1211 = vpop.permute.xlu0 %1210
    %1214 = vset.pattern.permute.xlu0 0
    %1215 = vperm.xlu0 %1214, %v1149
    %v1216 = vpop.permute.xlu0 %1215
    %1219 = vset.pattern.permute.xlu0 0
    %1220 = vperm.xlu0 %1219, %v1150
    %v1221 = vpop.permute.xlu0 %1220
    %1224 = vset.pattern.permute.xlu0 0
    %1225 = vperm.xlu0 %1224, %v1151
    %v1226 = vpop.permute.xlu0 %1225
    %1229 = vset.pattern.permute.xlu0 0
    %1230 = vperm.xlu0 %1229, %v1152
    %v1231 = vpop.permute.xlu0 %1230
    %1234 = vset.pattern.permute.xlu0 0
    %1235 = vperm.xlu0 %1234, %v1153
    %v1236 = vpop.permute.xlu0 %1235
    %1239 = vset.pattern.permute.xlu0 0
    %1240 = vperm.xlu0 %1239, %v1154
    %v1241 = vpop.permute.xlu0 %1240
    %1244 = vset.pattern.permute.xlu0 0
    %1245 = vperm.xlu0 %1244, %v1155
    %v1246 = vpop.permute.xlu0 %1245
    %1249 = vset.pattern.permute.xlu0 0
    %1250 = vperm.xlu0 %1249, %v1156
    %v1251 = vpop.permute.xlu0 %1250
    %1254 = vset.pattern.permute.xlu0 0
    %1255 = vperm.xlu0 %1254, %v1157
    %v1256 = vpop.permute.xlu0 %1255
    %1259 = vset.pattern.permute.xlu0 0
    %1260 = vperm.xlu0 %1259, %v1158
    %v1261 = vpop.permute.xlu0 %1260
    %1264 = vset.pattern.permute.xlu0 0
    %1265 = vperm.xlu0 %1264, %v1159
    %v1266 = vpop.permute.xlu0 %1265
    %1269 = vset.pattern.permute.xlu0 0
    %1270 = vperm.xlu0 %1269, %v1160
    %v1271 = vpop.permute.xlu0 %1270
    %1274 = vset.pattern.permute.xlu0 0
    %1275 = vperm.xlu0 %1274, %v1161
    %v1276 = vpop.permute.xlu0 %1275
    %1279 = vset.pattern.permute.xlu0 0
    %1280 = vperm.xlu0 %1279, %v1162
    %v1281 = vpop.permute.xlu0 %1280
    %1284 = vset.pattern.permute.xlu0 0
    %1285 = vperm.xlu0 %1284, %v1163
    %v1286 = vpop.permute.xlu0 %1285
    %1289 = vset.pattern.permute.xlu0 0
    %1290 = vperm.xlu0 %1289, %v1164
    %v1291 = vpop.permute.xlu0 %1290
    %1294 = vset.pattern.permute.xlu0 0
    %1295 = vperm.xlu0 %1294, %v1165
    %v1296 = vpop.permute.xlu0 %1295
    %1299 = vset.pattern.permute.xlu0 0
    %1300 = vperm.xlu0 %1299, %v1166
    %v1301 = vpop.permute.xlu0 %1300
    %1304 = vset.pattern.permute.xlu0 0
    %1305 = vperm.xlu0 %1304, %v1167
    %v1306 = vpop.permute.xlu0 %1305
    %1309 = vset.pattern.permute.xlu0 0
    %1310 = vperm.xlu0 %1309, %v1168
    %v1311 = vpop.permute.xlu0 %1310
    %1314 = vset.pattern.permute.xlu0 0
    %1315 = vperm.xlu0 %1314, %v1169
    %v1316 = vpop.permute.xlu0 %1315
    %1319 = vset.pattern.permute.xlu0 0
    %1320 = vperm.xlu0 %1319, %v1170
    %v1321 = vpop.permute.xlu0 %1320
    %1324 = vset.pattern.permute.xlu0 0
    %1325 = vperm.xlu0 %1324, %v1171
    %v1326 = vpop.permute.xlu0 %1325
    %1329 = vset.pattern.permute.xlu0 0
    %1330 = vperm.xlu0 %1329, %v1172
    %v1331 = vpop.permute.xlu0 %1330
    %1333 = vmatpush.msra.mxu0 %v964
    %1334 = vmatpush.msra.mxu0 %v963
    %1335 = vmatpush.msra.mxu0 %v962
    %1336 = vmatpush.msra.mxu0 %v961
    %1337 = vmatpush.msra.mxu0 %v960
    %1338 = vmatpush.msra.mxu0 %v959
    %1339 = vmatpush.msra.mxu0 %v958
    %1340 = vmatpush.msra.mxu0 %v957
    %1341 = vmatpush.msra.mxu0 %v956
    %1342 = vmatpush.msra.mxu0 %v955
    %1343 = vmatpush.msra.mxu0 %v954
    %1344 = vmatpush.msra.mxu0 %v953
    %1345 = vmatpush.msra.mxu0 %v952
    %1346 = vmatpush.msra.mxu0 %v951
    %1347 = vmatpush.msra.mxu0 %v950
    %1348 = vmatpush.msra.mxu0 %v949
    %1349 = vmatmul.f32.gmra.mxu0 %v1013
    %v1350 = vpop.f32.mrf.mxu0
    %v1351 = vadd.f32 %v1176, %v1350
    %1352 = vmatmul.f32.gmra.mxu0 %v1017
    %v1353 = vpop.f32.mrf.mxu0
    %v1354 = vadd.f32 %v1181, %v1353
    %1355 = vmatmul.f32.gmra.mxu0 %v1021
    %v1356 = vpop.f32.mrf.mxu0
    %v1357 = vadd.f32 %v1186, %v1356
    %1358 = vmatmul.f32.gmra.mxu0 %v1025
    %v1359 = vpop.f32.mrf.mxu0
    %v1360 = vadd.f32 %v1191, %v1359
    %1361 = vmatmul.f32.gmra.mxu0 %v1029
    %v1362 = vpop.f32.mrf.mxu0
    %v1363 = vadd.f32 %v1196, %v1362
    %1364 = vmatmul.f32.gmra.mxu0 %v1033
    %v1365 = vpop.f32.mrf.mxu0
    %v1366 = vadd.f32 %v1201, %v1365
    %1367 = vmatmul.f32.gmra.mxu0 %v1037
    %v1368 = vpop.f32.mrf.mxu0
    %v1369 = vadd.f32 %v1206, %v1368
    %1370 = vmatmul.f32.gmra.mxu0 %v1041
    %v1371 = vpop.f32.mrf.mxu0
    %v1372 = vadd.f32 %v1211, %v1371
    %1373 = vmatmul.f32.gmra.mxu0 %v1045
    %v1374 = vpop.f32.mrf.mxu0
    %v1375 = vadd.f32 %v1216, %v1374
    %1376 = vmatmul.f32.gmra.mxu0 %v1049
    %v1377 = vpop.f32.mrf.mxu0
    %v1378 = vadd.f32 %v1221, %v1377
    %1379 = vmatmul.f32.gmra.mxu0 %v1053
    %v1380 = vpop.f32.mrf.mxu0
    %v1381 = vadd.f32 %v1226, %v1380
    %1382 = vmatmul.f32.gmra.mxu0 %v1057
    %v1383 = vpop.f32.mrf.mxu0
    %v1384 = vadd.f32 %v1231, %v1383
    %1385 = vmatmul.f32.gmra.mxu0 %v1061
    %v1386 = vpop.f32.mrf.mxu0
    %v1387 = vadd.f32 %v1236, %v1386
    %1388 = vmatmul.f32.gmra.mxu0 %v1065
    %v1389 = vpop.f32.mrf.mxu0
    %v1390 = vadd.f32 %v1241, %v1389
    %1391 = vmatmul.f32.gmra.mxu0 %v1069
    %v1392 = vpop.f32.mrf.mxu0
    %v1393 = vadd.f32 %v1246, %v1392
    %1394 = vmatmul.f32.gmra.mxu0 %v1073
    %v1395 = vpop.f32.mrf.mxu0
    %v1396 = vadd.f32 %v1251, %v1395
    %1397 = vmatmul.f32.gmra.mxu0 %v1077
    %v1398 = vpop.f32.mrf.mxu0
    %v1399 = vadd.f32 %v1256, %v1398
    %1400 = vmatmul.f32.gmra.mxu0 %v1081
    %v1401 = vpop.f32.mrf.mxu0
    %v1402 = vadd.f32 %v1261, %v1401
    %1403 = vmatmul.f32.gmra.mxu0 %v1085
    %v1404 = vpop.f32.mrf.mxu0
    %v1405 = vadd.f32 %v1266, %v1404
    %1406 = vmatmul.f32.gmra.mxu0 %v1089
    %v1407 = vpop.f32.mrf.mxu0
    %v1408 = vadd.f32 %v1271, %v1407
    %1409 = vmatmul.f32.gmra.mxu0 %v1093
    %v1410 = vpop.f32.mrf.mxu0
    %v1411 = vadd.f32 %v1276, %v1410
    %1412 = vmatmul.f32.gmra.mxu0 %v1097
    %v1413 = vpop.f32.mrf.mxu0
    %v1414 = vadd.f32 %v1281, %v1413
    %1415 = vmatmul.f32.gmra.mxu0 %v1101
    %v1416 = vpop.f32.mrf.mxu0
    %v1417 = vadd.f32 %v1286, %v1416
    %1418 = vmatmul.f32.gmra.mxu0 %v1105
    %v1419 = vpop.f32.mrf.mxu0
    %v1420 = vadd.f32 %v1291, %v1419
    %1421 = vmatmul.f32.gmra.mxu0 %v1109
    %v1422 = vpop.f32.mrf.mxu0
    %v1423 = vadd.f32 %v1296, %v1422
    %1424 = vmatmul.f32.gmra.mxu0 %v1113
    %v1425 = vpop.f32.mrf.mxu0
    %v1426 = vadd.f32 %v1301, %v1425
    %1427 = vmatmul.f32.gmra.mxu0 %v1117
    %v1428 = vpop.f32.mrf.mxu0
    %v1429 = vadd.f32 %v1306, %v1428
    %1430 = vmatmul.f32.gmra.mxu0 %v1121
    %v1431 = vpop.f32.mrf.mxu0
    %v1432 = vadd.f32 %v1311, %v1431
    %1433 = vmatmul.f32.gmra.mxu0 %v1125
    %v1434 = vpop.f32.mrf.mxu0
    %v1435 = vadd.f32 %v1316, %v1434
    %1436 = vmatmul.f32.gmra.mxu0 %v1129
    %v1437 = vpop.f32.mrf.mxu0
    %v1438 = vadd.f32 %v1321, %v1437
    %1439 = vmatmul.f32.gmra.mxu0 %v1133
    %v1440 = vpop.f32.mrf.mxu0
    %v1441 = vadd.f32 %v1326, %v1440
    %1442 = vmatmul.f32.gmra.mxu0 %v1137
    %v1443 = vpop.f32.mrf.mxu0
    %v1444 = vadd.f32 %v1331, %v1443
    %1445 = vdwg.mxu0
    %1446 = vmatpush.msra.mxu0 %v980
    %1447 = vmatpush.msra.mxu0 %v979
    %1448 = vmatpush.msra.mxu0 %v978
    %1449 = vmatpush.msra.mxu0 %v977
    %1450 = vmatpush.msra.mxu0 %v976
    %1451 = vmatpush.msra.mxu0 %v975
    %1452 = vmatpush.msra.mxu0 %v974
    %1453 = vmatpush.msra.mxu0 %v973
    %1454 = vmatpush.msra.mxu0 %v972
    %1455 = vmatpush.msra.mxu0 %v971
    %1456 = vmatpush.msra.mxu0 %v970
    %1457 = vmatpush.msra.mxu0 %v969
    %1458 = vmatpush.msra.mxu0 %v968
    %1459 = vmatpush.msra.mxu0 %v967
    %1460 = vmatpush.msra.mxu0 %v966
    %1461 = vmatpush.msra.mxu0 %v965
    %1462 = vmatmul.f32.gmra.mxu0 %v1014
    %v1463 = vpop.f32.mrf.mxu0
    %v1464 = vadd.f32 %v1351, %v1463
    %1465 = vmatmul.f32.gmra.mxu0 %v1018
    %v1466 = vpop.f32.mrf.mxu0
    %v1467 = vadd.f32 %v1354, %v1466
    %1468 = vmatmul.f32.gmra.mxu0 %v1022
    %v1469 = vpop.f32.mrf.mxu0
    %v1470 = vadd.f32 %v1357, %v1469
    %1471 = vmatmul.f32.gmra.mxu0 %v1026
    %v1472 = vpop.f32.mrf.mxu0
    %v1473 = vadd.f32 %v1360, %v1472
    %1474 = vmatmul.f32.gmra.mxu0 %v1030
    %v1475 = vpop.f32.mrf.mxu0
    %v1476 = vadd.f32 %v1363, %v1475
    %1477 = vmatmul.f32.gmra.mxu0 %v1034
    %v1478 = vpop.f32.mrf.mxu0
    %v1479 = vadd.f32 %v1366, %v1478
    %1480 = vmatmul.f32.gmra.mxu0 %v1038
    %v1481 = vpop.f32.mrf.mxu0
    %v1482 = vadd.f32 %v1369, %v1481
    %1483 = vmatmul.f32.gmra.mxu0 %v1042
    %v1484 = vpop.f32.mrf.mxu0
    %v1485 = vadd.f32 %v1372, %v1484
    %1486 = vmatmul.f32.gmra.mxu0 %v1046
    %v1487 = vpop.f32.mrf.mxu0
    %v1488 = vadd.f32 %v1375, %v1487
    %1489 = vmatmul.f32.gmra.mxu0 %v1050
    %v1490 = vpop.f32.mrf.mxu0
    %v1491 = vadd.f32 %v1378, %v1490
    %1492 = vmatmul.f32.gmra.mxu0 %v1054
    %v1493 = vpop.f32.mrf.mxu0
    %v1494 = vadd.f32 %v1381, %v1493
    %1495 = vmatmul.f32.gmra.mxu0 %v1058
    %v1496 = vpop.f32.mrf.mxu0
    %v1497 = vadd.f32 %v1384, %v1496
    %1498 = vmatmul.f32.gmra.mxu0 %v1062
    %v1499 = vpop.f32.mrf.mxu0
    %v1500 = vadd.f32 %v1387, %v1499
    %1501 = vmatmul.f32.gmra.mxu0 %v1066
    %v1502 = vpop.f32.mrf.mxu0
    %v1503 = vadd.f32 %v1390, %v1502
    %1504 = vmatmul.f32.gmra.mxu0 %v1070
    %v1505 = vpop.f32.mrf.mxu0
    %v1506 = vadd.f32 %v1393, %v1505
    %1507 = vmatmul.f32.gmra.mxu0 %v1074
    %v1508 = vpop.f32.mrf.mxu0
    %v1509 = vadd.f32 %v1396, %v1508
    %1510 = vmatmul.f32.gmra.mxu0 %v1078
    %v1511 = vpop.f32.mrf.mxu0
    %v1512 = vadd.f32 %v1399, %v1511
    %1513 = vmatmul.f32.gmra.mxu0 %v1082
    %v1514 = vpop.f32.mrf.mxu0
    %v1515 = vadd.f32 %v1402, %v1514
    %1516 = vmatmul.f32.gmra.mxu0 %v1086
    %v1517 = vpop.f32.mrf.mxu0
    %v1518 = vadd.f32 %v1405, %v1517
    %1519 = vmatmul.f32.gmra.mxu0 %v1090
    %v1520 = vpop.f32.mrf.mxu0
    %v1521 = vadd.f32 %v1408, %v1520
    %1522 = vmatmul.f32.gmra.mxu0 %v1094
    %v1523 = vpop.f32.mrf.mxu0
    %v1524 = vadd.f32 %v1411, %v1523
    %1525 = vmatmul.f32.gmra.mxu0 %v1098
    %v1526 = vpop.f32.mrf.mxu0
    %v1527 = vadd.f32 %v1414, %v1526
    %1528 = vmatmul.f32.gmra.mxu0 %v1102
    %v1529 = vpop.f32.mrf.mxu0
    %v1530 = vadd.f32 %v1417, %v1529
    %1531 = vmatmul.f32.gmra.mxu0 %v1106
    %v1532 = vpop.f32.mrf.mxu0
    %v1533 = vadd.f32 %v1420, %v1532
    %1534 = vmatmul.f32.gmra.mxu0 %v1110
    %v1535 = vpop.f32.mrf.mxu0
    %v1536 = vadd.f32 %v1423, %v1535
    %1537 = vmatmul.f32.gmra.mxu0 %v1114
    %v1538 = vpop.f32.mrf.mxu0
    %v1539 = vadd.f32 %v1426, %v1538
    %1540 = vmatmul.f32.gmra.mxu0 %v1118
    %v1541 = vpop.f32.mrf.mxu0
    %v1542 = vadd.f32 %v1429, %v1541
    %1543 = vmatmul.f32.gmra.mxu0 %v1122
    %v1544 = vpop.f32.mrf.mxu0
    %v1545 = vadd.f32 %v1432, %v1544
    %1546 = vmatmul.f32.gmra.mxu0 %v1126
    %v1547 = vpop.f32.mrf.mxu0
    %v1548 = vadd.f32 %v1435, %v1547
    %1549 = vmatmul.f32.gmra.mxu0 %v1130
    %v1550 = vpop.f32.mrf.mxu0
    %v1551 = vadd.f32 %v1438, %v1550
    %1552 = vmatmul.f32.gmra.mxu0 %v1134
    %v1553 = vpop.f32.mrf.mxu0
    %v1554 = vadd.f32 %v1441, %v1553
    %1555 = vmatmul.f32.gmra.mxu0 %v1138
    %v1556 = vpop.f32.mrf.mxu0
    %v1557 = vadd.f32 %v1444, %v1556
    %1558 = vdwg.mxu0
    %1559 = vmatpush.msra.mxu0 %v996
    %1560 = vmatpush.msra.mxu0 %v995
    %1561 = vmatpush.msra.mxu0 %v994
    %1562 = vmatpush.msra.mxu0 %v993
    %1563 = vmatpush.msra.mxu0 %v992
    %1564 = vmatpush.msra.mxu0 %v991
    %1565 = vmatpush.msra.mxu0 %v990
    %1566 = vmatpush.msra.mxu0 %v989
    %1567 = vmatpush.msra.mxu0 %v988
    %1568 = vmatpush.msra.mxu0 %v987
    %1569 = vmatpush.msra.mxu0 %v986
    %1570 = vmatpush.msra.mxu0 %v985
    %1571 = vmatpush.msra.mxu0 %v984
    %1572 = vmatpush.msra.mxu0 %v983
    %1573 = vmatpush.msra.mxu0 %v982
    %1574 = vmatpush.msra.mxu0 %v981
    %1575 = vmatmul.f32.gmra.mxu0 %v1015
    %v1576 = vpop.f32.mrf.mxu0
    %v1577 = vadd.f32 %v1464, %v1576
    %1578 = vmatmul.f32.gmra.mxu0 %v1019
    %v1579 = vpop.f32.mrf.mxu0
    %v1580 = vadd.f32 %v1467, %v1579
    %1581 = vmatmul.f32.gmra.mxu0 %v1023
    %v1582 = vpop.f32.mrf.mxu0
    %v1583 = vadd.f32 %v1470, %v1582
    %1584 = vmatmul.f32.gmra.mxu0 %v1027
    %v1585 = vpop.f32.mrf.mxu0
    %v1586 = vadd.f32 %v1473, %v1585
    %1587 = vmatmul.f32.gmra.mxu0 %v1031
    %v1588 = vpop.f32.mrf.mxu0
    %v1589 = vadd.f32 %v1476, %v1588
    %1590 = vmatmul.f32.gmra.mxu0 %v1035
    %v1591 = vpop.f32.mrf.mxu0
    %v1592 = vadd.f32 %v1479, %v1591
    %1593 = vmatmul.f32.gmra.mxu0 %v1039
    %v1594 = vpop.f32.mrf.mxu0
    %v1595 = vadd.f32 %v1482, %v1594
    %1596 = vmatmul.f32.gmra.mxu0 %v1043
    %v1597 = vpop.f32.mrf.mxu0
    %v1598 = vadd.f32 %v1485, %v1597
    %1599 = vmatmul.f32.gmra.mxu0 %v1047
    %v1600 = vpop.f32.mrf.mxu0
    %v1601 = vadd.f32 %v1488, %v1600
    %1602 = vmatmul.f32.gmra.mxu0 %v1051
    %v1603 = vpop.f32.mrf.mxu0
    %v1604 = vadd.f32 %v1491, %v1603
    %1605 = vmatmul.f32.gmra.mxu0 %v1055
    %v1606 = vpop.f32.mrf.mxu0
    %v1607 = vadd.f32 %v1494, %v1606
    %1608 = vmatmul.f32.gmra.mxu0 %v1059
    %v1609 = vpop.f32.mrf.mxu0
    %v1610 = vadd.f32 %v1497, %v1609
    %1611 = vmatmul.f32.gmra.mxu0 %v1063
    %v1612 = vpop.f32.mrf.mxu0
    %v1613 = vadd.f32 %v1500, %v1612
    %1614 = vmatmul.f32.gmra.mxu0 %v1067
    %v1615 = vpop.f32.mrf.mxu0
    %v1616 = vadd.f32 %v1503, %v1615
    %1617 = vmatmul.f32.gmra.mxu0 %v1071
    %v1618 = vpop.f32.mrf.mxu0
    %v1619 = vadd.f32 %v1506, %v1618
    %1620 = vmatmul.f32.gmra.mxu0 %v1075
    %v1621 = vpop.f32.mrf.mxu0
    %v1622 = vadd.f32 %v1509, %v1621
    %1623 = vmatmul.f32.gmra.mxu0 %v1079
    %v1624 = vpop.f32.mrf.mxu0
    %v1625 = vadd.f32 %v1512, %v1624
    %1626 = vmatmul.f32.gmra.mxu0 %v1083
    %v1627 = vpop.f32.mrf.mxu0
    %v1628 = vadd.f32 %v1515, %v1627
    %1629 = vmatmul.f32.gmra.mxu0 %v1087
    %v1630 = vpop.f32.mrf.mxu0
    %v1631 = vadd.f32 %v1518, %v1630
    %1632 = vmatmul.f32.gmra.mxu0 %v1091
    %v1633 = vpop.f32.mrf.mxu0
    %v1634 = vadd.f32 %v1521, %v1633
    %1635 = vmatmul.f32.gmra.mxu0 %v1095
    %v1636 = vpop.f32.mrf.mxu0
    %v1637 = vadd.f32 %v1524, %v1636
    %1638 = vmatmul.f32.gmra.mxu0 %v1099
    %v1639 = vpop.f32.mrf.mxu0
    %v1640 = vadd.f32 %v1527, %v1639
    %1641 = vmatmul.f32.gmra.mxu0 %v1103
    %v1642 = vpop.f32.mrf.mxu0
    %v1643 = vadd.f32 %v1530, %v1642
    %1644 = vmatmul.f32.gmra.mxu0 %v1107
    %v1645 = vpop.f32.mrf.mxu0
    %v1646 = vadd.f32 %v1533, %v1645
    %1647 = vmatmul.f32.gmra.mxu0 %v1111
    %v1648 = vpop.f32.mrf.mxu0
    %v1649 = vadd.f32 %v1536, %v1648
    %1650 = vmatmul.f32.gmra.mxu0 %v1115
    %v1651 = vpop.f32.mrf.mxu0
    %v1652 = vadd.f32 %v1539, %v1651
    %1653 = vmatmul.f32.gmra.mxu0 %v1119
    %v1654 = vpop.f32.mrf.mxu0
    %v1655 = vadd.f32 %v1542, %v1654
    %1656 = vmatmul.f32.gmra.mxu0 %v1123
    %v1657 = vpop.f32.mrf.mxu0
    %v1658 = vadd.f32 %v1545, %v1657
    %1659 = vmatmul.f32.gmra.mxu0 %v1127
    %v1660 = vpop.f32.mrf.mxu0
    %v1661 = vadd.f32 %v1548, %v1660
    %1662 = vmatmul.f32.gmra.mxu0 %v1131
    %v1663 = vpop.f32.mrf.mxu0
    %v1664 = vadd.f32 %v1551, %v1663
    %1665 = vmatmul.f32.gmra.mxu0 %v1135
    %v1666 = vpop.f32.mrf.mxu0
    %v1667 = vadd.f32 %v1554, %v1666
    %1668 = vmatmul.f32.gmra.mxu0 %v1139
    %v1669 = vpop.f32.mrf.mxu0
    %v1670 = vadd.f32 %v1557, %v1669
    %1671 = vdwg.mxu0
    %1672 = vmatpush.msra.mxu0 %v1012
    %1673 = vmatpush.msra.mxu0 %v1011
    %1674 = vmatpush.msra.mxu0 %v1010
    %1675 = vmatpush.msra.mxu0 %v1009
    %1676 = vmatpush.msra.mxu0 %v1008
    %1677 = vmatpush.msra.mxu0 %v1007
    %1678 = vmatpush.msra.mxu0 %v1006
    %1679 = vmatpush.msra.mxu0 %v1005
    %1680 = vmatpush.msra.mxu0 %v1004
    %1681 = vmatpush.msra.mxu0 %v1003
    %1682 = vmatpush.msra.mxu0 %v1002
    %1683 = vmatpush.msra.mxu0 %v1001
    %1684 = vmatpush.msra.mxu0 %v1000
    %1685 = vmatpush.msra.mxu0 %v999
    %1686 = vmatpush.msra.mxu0 %v998
    %1687 = vmatpush.msra.mxu0 %v997
    %1688 = vmatmul.f32.gmra.mxu0 %v1016
    %v1689 = vpop.f32.mrf.mxu0
    %v1690 = vadd.f32 %v1577, %v1689
    %1691 = vmatmul.f32.gmra.mxu0 %v1020
    %v1692 = vpop.f32.mrf.mxu0
    %v1693 = vadd.f32 %v1580, %v1692
    %1694 = vmatmul.f32.gmra.mxu0 %v1024
    %v1695 = vpop.f32.mrf.mxu0
    %v1696 = vadd.f32 %v1583, %v1695
    %1697 = vmatmul.f32.gmra.mxu0 %v1028
    %v1698 = vpop.f32.mrf.mxu0
    %v1699 = vadd.f32 %v1586, %v1698
    %1700 = vmatmul.f32.gmra.mxu0 %v1032
    %v1701 = vpop.f32.mrf.mxu0
    %v1702 = vadd.f32 %v1589, %v1701
    %1703 = vmatmul.f32.gmra.mxu0 %v1036
    %v1704 = vpop.f32.mrf.mxu0
    %v1705 = vadd.f32 %v1592, %v1704
    %1706 = vmatmul.f32.gmra.mxu0 %v1040
    %v1707 = vpop.f32.mrf.mxu0
    %v1708 = vadd.f32 %v1595, %v1707
    %1709 = vmatmul.f32.gmra.mxu0 %v1044
    %v1710 = vpop.f32.mrf.mxu0
    %v1711 = vadd.f32 %v1598, %v1710
    %1712 = vmatmul.f32.gmra.mxu0 %v1048
    %v1713 = vpop.f32.mrf.mxu0
    %v1714 = vadd.f32 %v1601, %v1713
    %1715 = vmatmul.f32.gmra.mxu0 %v1052
    %v1716 = vpop.f32.mrf.mxu0
    %v1717 = vadd.f32 %v1604, %v1716
    %1718 = vmatmul.f32.gmra.mxu0 %v1056
    %v1719 = vpop.f32.mrf.mxu0
    %v1720 = vadd.f32 %v1607, %v1719
    %1721 = vmatmul.f32.gmra.mxu0 %v1060
    %v1722 = vpop.f32.mrf.mxu0
    %v1723 = vadd.f32 %v1610, %v1722
    %1724 = vmatmul.f32.gmra.mxu0 %v1064
    %v1725 = vpop.f32.mrf.mxu0
    %v1726 = vadd.f32 %v1613, %v1725
    %1727 = vmatmul.f32.gmra.mxu0 %v1068
    %v1728 = vpop.f32.mrf.mxu0
    %v1729 = vadd.f32 %v1616, %v1728
    %1730 = vmatmul.f32.gmra.mxu0 %v1072
    %v1731 = vpop.f32.mrf.mxu0
    %v1732 = vadd.f32 %v1619, %v1731
    %1733 = vmatmul.f32.gmra.mxu0 %v1076
    %v1734 = vpop.f32.mrf.mxu0
    %v1735 = vadd.f32 %v1622, %v1734
    %1736 = vmatmul.f32.gmra.mxu0 %v1080
    %v1737 = vpop.f32.mrf.mxu0
    %v1738 = vadd.f32 %v1625, %v1737
    %1739 = vmatmul.f32.gmra.mxu0 %v1084
    %v1740 = vpop.f32.mrf.mxu0
    %v1741 = vadd.f32 %v1628, %v1740
    %1742 = vmatmul.f32.gmra.mxu0 %v1088
    %v1743 = vpop.f32.mrf.mxu0
    %v1744 = vadd.f32 %v1631, %v1743
    %1745 = vmatmul.f32.gmra.mxu0 %v1092
    %v1746 = vpop.f32.mrf.mxu0
    %v1747 = vadd.f32 %v1634, %v1746
    %1748 = vmatmul.f32.gmra.mxu0 %v1096
    %v1749 = vpop.f32.mrf.mxu0
    %v1750 = vadd.f32 %v1637, %v1749
    %1751 = vmatmul.f32.gmra.mxu0 %v1100
    %v1752 = vpop.f32.mrf.mxu0
    %v1753 = vadd.f32 %v1640, %v1752
    %1754 = vmatmul.f32.gmra.mxu0 %v1104
    %v1755 = vpop.f32.mrf.mxu0
    %v1756 = vadd.f32 %v1643, %v1755
    %1757 = vmatmul.f32.gmra.mxu0 %v1108
    %v1758 = vpop.f32.mrf.mxu0
    %v1759 = vadd.f32 %v1646, %v1758
    %1760 = vmatmul.f32.gmra.mxu0 %v1112
    %v1761 = vpop.f32.mrf.mxu0
    %v1762 = vadd.f32 %v1649, %v1761
    %1763 = vmatmul.f32.gmra.mxu0 %v1116
    %v1764 = vpop.f32.mrf.mxu0
    %v1765 = vadd.f32 %v1652, %v1764
    %1766 = vmatmul.f32.gmra.mxu0 %v1120
    %v1767 = vpop.f32.mrf.mxu0
    %v1768 = vadd.f32 %v1655, %v1767
    %1769 = vmatmul.f32.gmra.mxu0 %v1124
    %v1770 = vpop.f32.mrf.mxu0
    %v1771 = vadd.f32 %v1658, %v1770
    %1772 = vmatmul.f32.gmra.mxu0 %v1128
    %v1773 = vpop.f32.mrf.mxu0
    %v1774 = vadd.f32 %v1661, %v1773
    %1775 = vmatmul.f32.gmra.mxu0 %v1132
    %v1776 = vpop.f32.mrf.mxu0
    %v1777 = vadd.f32 %v1664, %v1776
    %1778 = vmatmul.f32.gmra.mxu0 %v1136
    %v1779 = vpop.f32.mrf.mxu0
    %v1780 = vadd.f32 %v1667, %v1779
    %1781 = vmatmul.f32.gmra.mxu0 %v1140
    %v1782 = vpop.f32.mrf.mxu0
    %v1783 = vadd.f32 %v1670, %v1782
    %1784 = vdwg.mxu0
    %v1785 = vmax.f32 %v1690, 0.0
    %v1786 = vmax.f32 %v1693, 0.0
    %v1787 = vmax.f32 %v1696, 0.0
    %v1788 = vmax.f32 %v1699, 0.0
    %v1789 = vmax.f32 %v1702, 0.0
    %v1790 = vmax.f32 %v1705, 0.0
    %v1791 = vmax.f32 %v1708, 0.0
    %v1792 = vmax.f32 %v1711, 0.0
    %v1793 = vmax.f32 %v1714, 0.0
    %v1794 = vmax.f32 %v1717, 0.0
    %v1795 = vmax.f32 %v1720, 0.0
    %v1796 = vmax.f32 %v1723, 0.0
    %v1797 = vmax.f32 %v1726, 0.0
    %v1798 = vmax.f32 %v1729, 0.0
    %v1799 = vmax.f32 %v1732, 0.0
    %v1800 = vmax.f32 %v1735, 0.0
    %v1801 = vmax.f32 %v1738, 0.0
    %v1802 = vmax.f32 %v1741, 0.0
    %v1803 = vmax.f32 %v1744, 0.0
    %v1804 = vmax.f32 %v1747, 0.0
    %v1805 = vmax.f32 %v1750, 0.0
    %v1806 = vmax.f32 %v1753, 0.0
    %v1807 = vmax.f32 %v1756, 0.0
    %v1808 = vmax.f32 %v1759, 0.0
    %v1809 = vmax.f32 %v1762, 0.0
    %v1810 = vmax.f32 %v1765, 0.0
    %v1811 = vmax.f32 %v1768, 0.0
    %v1812 = vmax.f32 %v1771, 0.0
    %v1813 = vmax.f32 %v1774, 0.0
    %v1814 = vmax.f32 %v1777, 0.0
    %v1815 = vmax.f32 %v1780, 0.0
    %v1816 = vmax.f32 %v1783, 0.0
    %v1817 = vld [vmem:[%s5] sm:$0xff]
    %v1818 = vld [vmem:[%s5 + $0x8] sm:$0xff]
    %v1819 = vld [vmem:[%s5 + $0x10] sm:$0xff]
    %v1820 = vld [vmem:[%s5 + $0x18] sm:$0xff]
    %v1821 = vld [vmem:[%s5 + $0x20] sm:$0xff]
    %v1822 = vld [vmem:[%s5 + $0x28] sm:$0xff]
    %v1823 = vld [vmem:[%s5 + $0x30] sm:$0xff]
    %v1824 = vld [vmem:[%s5 + $0x38] sm:$0xff]
    %v1825 = vld [vmem:[%s5 + $0x40] sm:$0xff]
    %v1826 = vld [vmem:[%s5 + $0x48] sm:$0xff]
    %v1827 = vld [vmem:[%s5 + $0x50] sm:$0xff]
    %v1828 = vld [vmem:[%s5 + $0x58] sm:$0xff]
    %v1829 = vld [vmem:[%s5 + $0x60] sm:$0xff]
    %v1830 = vld [vmem:[%s5 + $0x68] sm:$0xff]
    %v1831 = vld [vmem:[%s5 + $0x70] sm:$0xff]
    %v1832 = vld [vmem:[%s5 + $0x78] sm:$0xff]
    %v1833 = vld [vmem:[%s5 + $0x80] sm:$0xff]
    %v1834 = vld [vmem:[%s5 + $0x88] sm:$0xff]
    %v1835 = vld [vmem:[%s5 + $0x90] sm:$0xff]
    %v1836 = vld [vmem:[%s5 + $0x98] sm:$0xff]
    %v1837 = vld [vmem:[%s5 + $0xa0] sm:$0xff]
    %v1838 = vld [vmem:[%s5 + $0xa8] sm:$0xff]
    %v1839 = vld [vmem:[%s5 + $0xb0] sm:$0xff]
    %v1840 = vld [vmem:[%s5 + $0xb8] sm:$0xff]
    %v1841 = vld [vmem:[%s5 + $0xc0] sm:$0xff]
    %v1842 = vld [vmem:[%s5 + $0xc8] sm:$0xff]
    %v1843 = vld [vmem:[%s5 + $0xd0] sm:$0xff]
    %v1844 = vld [vmem:[%s5 + $0xd8] sm:$0xff]
    %v1845 = vld [vmem:[%s5 + $0xe0] sm:$0xff]
    %v1846 = vld [vmem:[%s5 + $0xe8] sm:$0xff]
    %v1847 = vld [vmem:[%s5 + $0xf0] sm:$0xff]
    %v1848 = vld [vmem:[%s5 + $0xf8] sm:$0xff]
    %v1849 = vld [vmem:[%s6] sm:$0xff]
    %v1850 = vld [vmem:[%s6 + $0x8] sm:$0xff]
    %v1851 = vld [vmem:[%s6 + $0x10] sm:$0xff]
    %v1852 = vld [vmem:[%s6 + $0x18] sm:$0xff]
    %v1853 = vld [vmem:[%s6 + $0x20] sm:$0xff]
    %v1854 = vld [vmem:[%s6 + $0x28] sm:$0xff]
    %v1855 = vld [vmem:[%s6 + $0x30] sm:$0xff]
    %v1856 = vld [vmem:[%s6 + $0x38] sm:$0xff]
    %v1857 = vld [vmem:[%s6 + $0x40] sm:$0xff]
    %v1858 = vld [vmem:[%s6 + $0x48] sm:$0xff]
    %v1859 = vld [vmem:[%s6 + $0x50] sm:$0xff]
    %v1860 = vld [vmem:[%s6 + $0x58] sm:$0xff]
    %v1861 = vld [vmem:[%s6 + $0x60] sm:$0xff]
    %v1862 = vld [vmem:[%s6 + $0x68] sm:$0xff]
    %v1863 = vld [vmem:[%s6 + $0x70] sm:$0xff]
    %v1864 = vld [vmem:[%s6 + $0x78] sm:$0xff]
    %1866 = vset.pattern.permute.xlu0 0
    %1867 = vperm.xlu0 %1866, %v1849
    %v1868 = vpop.permute.xlu0 %1867
    %1871 = vset.pattern.permute.xlu0 0
    %1872 = vperm.xlu0 %1871, %v1850
    %v1873 = vpop.permute.xlu0 %1872
    %1876 = vset.pattern.permute.xlu0 0
    %1877 = vperm.xlu0 %1876, %v1851
    %v1878 = vpop.permute.xlu0 %1877
    %1881 = vset.pattern.permute.xlu0 0
    %1882 = vperm.xlu0 %1881, %v1852
    %v1883 = vpop.permute.xlu0 %1882
    %1886 = vset.pattern.permute.xlu0 0
    %1887 = vperm.xlu0 %1886, %v1853
    %v1888 = vpop.permute.xlu0 %1887
    %1891 = vset.pattern.permute.xlu0 0
    %1892 = vperm.xlu0 %1891, %v1854
    %v1893 = vpop.permute.xlu0 %1892
    %1896 = vset.pattern.permute.xlu0 0
    %1897 = vperm.xlu0 %1896, %v1855
    %v1898 = vpop.permute.xlu0 %1897
    %1901 = vset.pattern.permute.xlu0 0
    %1902 = vperm.xlu0 %1901, %v1856
    %v1903 = vpop.permute.xlu0 %1902
    %1906 = vset.pattern.permute.xlu0 0
    %1907 = vperm.xlu0 %1906, %v1857
    %v1908 = vpop.permute.xlu0 %1907
    %1911 = vset.pattern.permute.xlu0 0
    %1912 = vperm.xlu0 %1911, %v1858
    %v1913 = vpop.permute.xlu0 %1912
    %1916 = vset.pattern.permute.xlu0 0
    %1917 = vperm.xlu0 %1916, %v1859
    %v1918 = vpop.permute.xlu0 %1917
    %1921 = vset.pattern.permute.xlu0 0
    %1922 = vperm.xlu0 %1921, %v1860
    %v1923 = vpop.permute.xlu0 %1922
    %1926 = vset.pattern.permute.xlu0 0
    %1927 = vperm.xlu0 %1926, %v1861
    %v1928 = vpop.permute.xlu0 %1927
    %1931 = vset.pattern.permute.xlu0 0
    %1932 = vperm.xlu0 %1931, %v1862
    %v1933 = vpop.permute.xlu0 %1932
    %1936 = vset.pattern.permute.xlu0 0
    %1937 = vperm.xlu0 %1936, %v1863
    %v1938 = vpop.permute.xlu0 %1937
    %1941 = vset.pattern.permute.xlu0 0
    %1942 = vperm.xlu0 %1941, %v1864
    %v1943 = vpop.permute.xlu0 %1942
    %1945 = vmatpush.msra.mxu0 %v1800
    %1946 = vmatpush.msra.mxu0 %v1799
    %1947 = vmatpush.msra.mxu0 %v1798
    %1948 = vmatpush.msra.mxu0 %v1797
    %1949 = vmatpush.msra.mxu0 %v1796
    %1950 = vmatpush.msra.mxu0 %v1795
    %1951 = vmatpush.msra.mxu0 %v1794
    %1952 = vmatpush.msra.mxu0 %v1793
    %1953 = vmatpush.msra.mxu0 %v1792
    %1954 = vmatpush.msra.mxu0 %v1791
    %1955 = vmatpush.msra.mxu0 %v1790
    %1956 = vmatpush.msra.mxu0 %v1789
    %1957 = vmatpush.msra.mxu0 %v1788
    %1958 = vmatpush.msra.mxu0 %v1787
    %1959 = vmatpush.msra.mxu0 %v1786
    %1960 = vmatpush.msra.mxu0 %v1785
    %1961 = vmatmul.f32.gmra.mxu0 %v1817
    %v1962 = vpop.f32.mrf.mxu0
    %v1963 = vadd.f32 %v1868, %v1962
    %1964 = vmatmul.f32.gmra.mxu0 %v1819
    %v1965 = vpop.f32.mrf.mxu0
    %v1966 = vadd.f32 %v1873, %v1965
    %1967 = vmatmul.f32.gmra.mxu0 %v1821
    %v1968 = vpop.f32.mrf.mxu0
    %v1969 = vadd.f32 %v1878, %v1968
    %1970 = vmatmul.f32.gmra.mxu0 %v1823
    %v1971 = vpop.f32.mrf.mxu0
    %v1972 = vadd.f32 %v1883, %v1971
    %1973 = vmatmul.f32.gmra.mxu0 %v1825
    %v1974 = vpop.f32.mrf.mxu0
    %v1975 = vadd.f32 %v1888, %v1974
    %1976 = vmatmul.f32.gmra.mxu0 %v1827
    %v1977 = vpop.f32.mrf.mxu0
    %v1978 = vadd.f32 %v1893, %v1977
    %1979 = vmatmul.f32.gmra.mxu0 %v1829
    %v1980 = vpop.f32.mrf.mxu0
    %v1981 = vadd.f32 %v1898, %v1980
    %1982 = vmatmul.f32.gmra.mxu0 %v1831
    %v1983 = vpop.f32.mrf.mxu0
    %v1984 = vadd.f32 %v1903, %v1983
    %1985 = vmatmul.f32.gmra.mxu0 %v1833
    %v1986 = vpop.f32.mrf.mxu0
    %v1987 = vadd.f32 %v1908, %v1986
    %1988 = vmatmul.f32.gmra.mxu0 %v1835
    %v1989 = vpop.f32.mrf.mxu0
    %v1990 = vadd.f32 %v1913, %v1989
    %1991 = vmatmul.f32.gmra.mxu0 %v1837
    %v1992 = vpop.f32.mrf.mxu0
    %v1993 = vadd.f32 %v1918, %v1992
    %1994 = vmatmul.f32.gmra.mxu0 %v1839
    %v1995 = vpop.f32.mrf.mxu0
    %v1996 = vadd.f32 %v1923, %v1995
    %1997 = vmatmul.f32.gmra.mxu0 %v1841
    %v1998 = vpop.f32.mrf.mxu0
    %v1999 = vadd.f32 %v1928, %v1998
    %2000 = vmatmul.f32.gmra.mxu0 %v1843
    %v2001 = vpop.f32.mrf.mxu0
    %v2002 = vadd.f32 %v1933, %v2001
    %2003 = vmatmul.f32.gmra.mxu0 %v1845
    %v2004 = vpop.f32.mrf.mxu0
    %v2005 = vadd.f32 %v1938, %v2004
    %2006 = vmatmul.f32.gmra.mxu0 %v1847
    %v2007 = vpop.f32.mrf.mxu0
    %v2008 = vadd.f32 %v1943, %v2007
    %2009 = vdwg.mxu0
    %2010 = vmatpush.msra.mxu0 %v1816
    %2011 = vmatpush.msra.mxu0 %v1815
    %2012 = vmatpush.msra.mxu0 %v1814
    %2013 = vmatpush.msra.mxu0 %v1813
    %2014 = vmatpush.msra.mxu0 %v1812
    %2015 = vmatpush.msra.mxu0 %v1811
    %2016 = vmatpush.msra.mxu0 %v1810
    %2017 = vmatpush.msra.mxu0 %v1809
    %2018 = vmatpush.msra.mxu0 %v1808
    %2019 = vmatpush.msra.mxu0 %v1807
    %2020 = vmatpush.msra.mxu0 %v1806
    %2021 = vmatpush.msra.mxu0 %v1805
    %2022 = vmatpush.msra.mxu0 %v1804
    %2023 = vmatpush.msra.mxu0 %v1803
    %2024 = vmatpush.msra.mxu0 %v1802
    %2025 = vmatpush.msra.mxu0 %v1801
    %2026 = vmatmul.f32.gmra.mxu0 %v1818
    %v2027 = vpop.f32.mrf.mxu0
    %v2028 = vadd.f32 %v1963, %v2027
    %2029 = vmatmul.f32.gmra.mxu0 %v1820
    %v2030 = vpop.f32.mrf.mxu0
    %v2031 = vadd.f32 %v1966, %v2030
    %2032 = vmatmul.f32.gmra.mxu0 %v1822
    %v2033 = vpop.f32.mrf.mxu0
    %v2034 = vadd.f32 %v1969, %v2033
    %2035 = vmatmul.f32.gmra.mxu0 %v1824
    %v2036 = vpop.f32.mrf.mxu0
    %v2037 = vadd.f32 %v1972, %v2036
    %2038 = vmatmul.f32.gmra.mxu0 %v1826
    %v2039 = vpop.f32.mrf.mxu0
    %v2040 = vadd.f32 %v1975, %v2039
    %2041 = vmatmul.f32.gmra.mxu0 %v1828
    %v2042 = vpop.f32.mrf.mxu0
    %v2043 = vadd.f32 %v1978, %v2042
    %2044 = vmatmul.f32.gmra.mxu0 %v1830
    %v2045 = vpop.f32.mrf.mxu0
    %v2046 = vadd.f32 %v1981, %v2045
    %2047 = vmatmul.f32.gmra.mxu0 %v1832
    %v2048 = vpop.f32.mrf.mxu0
    %v2049 = vadd.f32 %v1984, %v2048
    %2050 = vmatmul.f32.gmra.mxu0 %v1834
    %v2051 = vpop.f32.mrf.mxu0
    %v2052 = vadd.f32 %v1987, %v2051
    %2053 = vmatmul.f32.gmra.mxu0 %v1836
    %v2054 = vpop.f32.mrf.mxu0
    %v2055 = vadd.f32 %v1990, %v2054
    %2056 = vmatmul.f32.gmra.mxu0 %v1838
    %v2057 = vpop.f32.mrf.mxu0
    %v2058 = vadd.f32 %v1993, %v2057
    %2059 = vmatmul.f32.gmra.mxu0 %v1840
    %v2060 = vpop.f32.mrf.mxu0
    %v2061 = vadd.f32 %v1996, %v2060
    %2062 = vmatmul.f32.gmra.mxu0 %v1842
    %v2063 = vpop.f32.mrf.mxu0
    %v2064 = vadd.f32 %v1999, %v2063
    %2065 = vmatmul.f32.gmra.mxu0 %v1844
    %v2066 = vpop.f32.mrf.mxu0
    %v2067 = vadd.f32 %v2002, %v2066
    %2068 = vmatmul.f32.gmra.mxu0 %v1846
    %v2069 = vpop.f32.mrf.mxu0
    %v2070 = vadd.f32 %v2005, %v2069
    %2071 = vmatmul.f32.gmra.mxu0 %v1848
    %v2072 = vpop.f32.mrf.mxu0
    %v2073 = vadd.f32 %v2008, %v2072
    %2074 = vdwg.mxu0
    %v2075 = vmax.f32 %v2028, 0.0
    %v2076 = vmax.f32 %v2031, 0.0
    %v2077 = vmax.f32 %v2034, 0.0
    %v2078 = vmax.f32 %v2037, 0.0
    %v2079 = vmax.f32 %v2040, 0.0
    %v2080 = vmax.f32 %v2043, 0.0
    %v2081 = vmax.f32 %v2046, 0.0
    %v2082 = vmax.f32 %v2049, 0.0
    %v2083 = vmax.f32 %v2052, 0.0
    %v2084 = vmax.f32 %v2055, 0.0
    %v2085 = vmax.f32 %v2058, 0.0
    %v2086 = vmax.f32 %v2061, 0.0
    %v2087 = vmax.f32 %v2064, 0.0
    %v2088 = vmax.f32 %v2067, 0.0
    %v2089 = vmax.f32 %v2070, 0.0
    %v2090 = vmax.f32 %v2073, 0.0
    %v2091 = vld [vmem:[%s7] sm:$0xff]
    %v2092 = vld [vmem:[%s7 + $0x8] sm:$0xff]
    %v2093 = vld [vmem:[%s7 + $0x10] sm:$0xff]
    %v2094 = vld [vmem:[%s7 + $0x18] sm:$0xff]
    %v2095 = vld [vmem:[%s7 + $0x20] sm:$0xff]
    %v2096 = vld [vmem:[%s7 + $0x28] sm:$0xff]
    %v2097 = vld [vmem:[%s7 + $0x30] sm:$0xff]
    %v2098 = vld [vmem:[%s7 + $0x38] sm:$0xff]
    %v2099 = vld [vmem:[%s7 + $0x40] sm:$0xff]
    %v2100 = vld [vmem:[%s7 + $0x48] sm:$0xff]
    %v2101 = vld [vmem:[%s7 + $0x50] sm:$0xff]
    %v2102 = vld [vmem:[%s7 + $0x58] sm:$0xff]
    %v2103 = vld [vmem:[%s7 + $0x60] sm:$0xff]
    %v2104 = vld [vmem:[%s7 + $0x68] sm:$0xff]
    %v2105 = vld [vmem:[%s7 + $0x70] sm:$0xff]
    %v2106 = vld [vmem:[%s7 + $0x78] sm:$0xff]
    %2108 = vset.pattern.permute.xlu0 0
    %2109 = vperm.xlu0 %2108, %v2091
    %v2110 = vpop.permute.xlu0 %2109
    %2113 = vset.pattern.permute.xlu0 0
    %2114 = vperm.xlu0 %2113, %v2092
    %v2115 = vpop.permute.xlu0 %2114
    %2118 = vset.pattern.permute.xlu0 0
    %2119 = vperm.xlu0 %2118, %v2093
    %v2120 = vpop.permute.xlu0 %2119
    %2123 = vset.pattern.permute.xlu0 0
    %2124 = vperm.xlu0 %2123, %v2094
    %v2125 = vpop.permute.xlu0 %2124
    %2128 = vset.pattern.permute.xlu0 0
    %2129 = vperm.xlu0 %2128, %v2095
    %v2130 = vpop.permute.xlu0 %2129
    %2133 = vset.pattern.permute.xlu0 0
    %2134 = vperm.xlu0 %2133, %v2096
    %v2135 = vpop.permute.xlu0 %2134
    %2138 = vset.pattern.permute.xlu0 0
    %2139 = vperm.xlu0 %2138, %v2097
    %v2140 = vpop.permute.xlu0 %2139
    %2143 = vset.pattern.permute.xlu0 0
    %2144 = vperm.xlu0 %2143, %v2098
    %v2145 = vpop.permute.xlu0 %2144
    %2148 = vset.pattern.permute.xlu0 0
    %2149 = vperm.xlu0 %2148, %v2099
    %v2150 = vpop.permute.xlu0 %2149
    %2153 = vset.pattern.permute.xlu0 0
    %2154 = vperm.xlu0 %2153, %v2100
    %v2155 = vpop.permute.xlu0 %2154
    %2158 = vset.pattern.permute.xlu0 0
    %2159 = vperm.xlu0 %2158, %v2101
    %v2160 = vpop.permute.xlu0 %2159
    %2163 = vset.pattern.permute.xlu0 0
    %2164 = vperm.xlu0 %2163, %v2102
    %v2165 = vpop.permute.xlu0 %2164
    %2168 = vset.pattern.permute.xlu0 0
    %2169 = vperm.xlu0 %2168, %v2103
    %v2170 = vpop.permute.xlu0 %2169
    %2173 = vset.pattern.permute.xlu0 0
    %2174 = vperm.xlu0 %2173, %v2104
    %v2175 = vpop.permute.xlu0 %2174
    %2178 = vset.pattern.permute.xlu0 0
    %2179 = vperm.xlu0 %2178, %v2105
    %v2180 = vpop.permute.xlu0 %2179
    %2183 = vset.pattern.permute.xlu0 0
    %2184 = vperm.xlu0 %2183, %v2106
    %v2185 = vpop.permute.xlu0 %2184
    %v2187 = vmul.f32 %v2075, %v2110
    %v2188 = vmul.f32 %v2076, %v2115
    %v2189 = vmul.f32 %v2077, %v2120
    %v2190 = vmul.f32 %v2078, %v2125
    %v2191 = vmul.f32 %v2079, %v2130
    %v2192 = vmul.f32 %v2080, %v2135
    %v2193 = vmul.f32 %v2081, %v2140
    %v2194 = vmul.f32 %v2082, %v2145
    %v2195 = vmul.f32 %v2083, %v2150
    %v2196 = vmul.f32 %v2084, %v2155
    %v2197 = vmul.f32 %v2085, %v2160
    %v2198 = vmul.f32 %v2086, %v2165
    %v2199 = vmul.f32 %v2087, %v2170
    %v2200 = vmul.f32 %v2088, %v2175
    %v2201 = vmul.f32 %v2089, %v2180
    %v2202 = vmul.f32 %v2090, %v2185
    %v2203 = vadd.f32 %v2187, %v2188
    %v2204 = vadd.f32 %v2203, %v2189
    %v2205 = vadd.f32 %v2204, %v2190
    %v2206 = vadd.f32 %v2205, %v2191
    %v2207 = vadd.f32 %v2206, %v2192
    %v2208 = vadd.f32 %v2207, %v2193
    %v2209 = vadd.f32 %v2208, %v2194
    %v2210 = vadd.f32 %v2209, %v2195
    %v2211 = vadd.f32 %v2210, %v2196
    %v2212 = vadd.f32 %v2211, %v2197
    %v2213 = vadd.f32 %v2212, %v2198
    %v2214 = vadd.f32 %v2213, %v2199
    %v2215 = vadd.f32 %v2214, %v2200
    %v2216 = vadd.f32 %v2215, %v2201
    %v2217 = vadd.f32 %v2216, %v2202
    %v2218 = vrot.slane %v2217, 4
    %v2219 = vadd.f32 %v2217, %v2218
    %v2220 = vrot.slane %v2219, 2
    %v2221 = vadd.f32 %v2219, %v2220
    %v2222 = vrot.slane %v2221, 1
    %v2223 = vadd.f32 %v2221, %v2222
    %v2224 = vld [vmem:[#allocation2] sm:$0x1]
    %2226 = vset.pattern.permute.xlu0 0
    %2227 = vperm.xlu0 %2226, %v2224
    %v2228 = vpop.permute.xlu0 %2227
    %v2230 = vperm.slane %v2228, 0
    %v2231 = vadd.f32 %v2223, %v2230
    %2232 = vst [vmem:[#allocation3] sm:$0x1] %v2231
    // Predicated region
    $region38: #{tpu_custom_call.1} parent=1 // pred_check
      _
    $region39: #{tpu_custom_call.1} parent=1 // pred_check_branch
      %2234 = sbr.rel (0) target = $region41
    $region40: #{tpu_custom_call.1} parent=1 // pred_region
      %2236 = vsyncadd [#allocation4], 0
      %s2238 = sshll.u32 [#allocation3], 4
      %s2239 = int_to_ptr.vmem [resolvable:$true] %s2238
      %s2240 = sshll.u32 %s9, 4
      %s2241 = int_to_ptr.hbm [resolvable:$true] %s2240
      %2243 = dma.vmem_to_hbm [thread:$0]  %s2239, 16, %s2241, [#allocation4]
    $region41: #{tpu_custom_call.1} parent=1 // pred_fallthru
      _
    // Predicated region
    $region42: #{tpu_custom_call.1} parent=1 // pred_check
      _
    $region43: #{tpu_custom_call.1} parent=1 // pred_check_branch
      %2245 = sbr.rel (0) target = $region45
    $region44: #{tpu_custom_call.1} parent=1 // pred_region
      %2247 = dma.done [#allocation4], 16
    $region45: #{tpu_custom_call.1} parent=1 // pred_fallthru
      _
    %2248 = vsyncpa [#allocation4], 1

</llo_original>
